<compile_context>
chip_gen: v6e
topology: v6e:2x2x1
jax: 0.10.0
libtpu: 0.0.40
codegen_flags: <defaults>
</compile_context>

<pallas_src>
import jax
import jax.numpy as jnp
from jax.experimental import pallas as pl
from jax.experimental.pallas import tpu as pltpu

# ---- synthetic config (config['body_repr']='ssm2_67', use_cont=False) ----
NK = 67
IN_DIM = NK * 3                      # 201
BODY_DIM = 3 + 1 * 3 + 21 * 3 + 24   # 93
BODY_PAD = 128                       # lane-dense padded body dim
BETA_DIM = 10
H_DIM = 32                           # config['h_dim']
N_BLOCKS = 2                         # config['n_blocks']
N_RECUR = 2                          # config['n_recur']
# actfun = 'relu'


def mosh_kernel(xr_ref, betas_ref,
                w_xr_ref, w_bt_ref, b_in_ref, w_xb_ref,
                w1_ref, b1_ref, w2_ref, b2_ref,
                w_out_ref, b_out_ref,
                out_ref):
    """One batch tile of the recurrent ResNet regressor.

    xr_ref:    [TB, 201]   flattened target markers (batch tile)
    betas_ref: [TB, 10]    body shape
    w_xr:      [201, H]    in_fc weight rows for xr   (weight.T layout)
    w_bt:      [10, H]     in_fc weight rows for betas
    b_in:      [1, H]      in_fc bias
    w_xb:      [128, H]    in_fc weight rows for xb, zero-padded 93 -> 128
    w1/w2:     [N_BLOCKS, H, H]   residual MLP weights (transposed)
    b1/b2:     [N_BLOCKS, 1, H]
    w_out:     [H, 128]  (zero-padded N 93 -> 128), b_out: [1, 128]
    out_ref:   [TB, 128]  (cols 93: are zero)
    """
    # ---- loop-invariant: base = xr @ W_xr + betas @ W_bt + b_in ----
    base = (jnp.dot(xr_ref[...], w_xr_ref[...],
                    preferred_element_type=jnp.float32)
            + jnp.dot(betas_ref[...], w_bt_ref[...],
                      preferred_element_type=jnp.float32)
            + b_in_ref[...])

    # hoist weights / biases once (Python loops are unrolled; avoid re-loads)
    w_xb = w_xb_ref[...]
    w_out = w_out_ref[...]
    b_out = b_out_ref[...]
    w1 = [w1_ref[blk] for blk in range(N_BLOCKS)]
    b1 = [b1_ref[blk] for blk in range(N_BLOCKS)]
    w2 = [w2_ref[blk] for blk in range(N_BLOCKS)]
    b2 = [b2_ref[blk] for blk in range(N_BLOCKS)]

    def resnet_tail(h):
        # residual MLP blocks + out_fc
        for blk in range(N_BLOCKS):
            t = jnp.maximum(
                jnp.dot(h, w1[blk], preferred_element_type=jnp.float32)
                + b1[blk], 0.0)
            t = jnp.maximum(
                jnp.dot(t, w2[blk], preferred_element_type=jnp.float32)
                + b2[blk], 0.0)
            h = t + h
        return jnp.dot(h, w_out, preferred_element_type=jnp.float32) + b_out

    # ---- peeled first recurrence iteration: xb == 0 -> h = base ----
    xb = resnet_tail(base)                       # [TB, 128]

    # ---- remaining recurrence iterations ----
    for _ in range(N_RECUR - 1):
        h = base + jnp.dot(xb, w_xb, preferred_element_type=jnp.float32)
        xb = resnet_tail(h) + xb

    out_ref[...] = xb


def init_params(key):
    """Deterministic synthetic parameters (PyTorch-Linear-like uniform init)."""
    ks = jax.random.split(key, 12)

    def lin_w(k, fan_in, fan_out):
        # weight stored already transposed: [fan_in, fan_out]
        bound = 1.0 / jnp.sqrt(fan_in)
        return jax.random.uniform(k, (fan_in, fan_out), jnp.float32, -bound, bound)

    def lin_b(k, fan_in, fan_out, lead=()):
        bound = 1.0 / jnp.sqrt(fan_in)
        return jax.random.uniform(k, lead + (1, fan_out), jnp.float32, -bound, bound)

    cat_dim = IN_DIM + BODY_DIM + BETA_DIM  # 304
    w_in = lin_w(ks[0], cat_dim, H_DIM)     # [304, H] == in_fc.weight.T
    params = dict(
        w_xr=w_in[:IN_DIM],                                   # [201, H]
        w_xb=w_in[IN_DIM:IN_DIM + BODY_DIM],                  # [93, H]
        w_bt=w_in[IN_DIM + BODY_DIM:],                        # [10, H]
        b_in=lin_b(ks[1], cat_dim, H_DIM),                    # [1, H]
        w1=jnp.stack([lin_w(k, H_DIM, H_DIM)
                      for k in jax.random.split(ks[2], N_BLOCKS)]),        # [NB,H,H]
        b1=jnp.concatenate([lin_b(k, H_DIM, H_DIM, (1,))
                            for k in jax.random.split(ks[3], N_BLOCKS)]),  # [NB,1,H]
        w2=jnp.stack([lin_w(k, H_DIM, H_DIM)
                      for k in jax.random.split(ks[4], N_BLOCKS)]),
        b2=jnp.concatenate([lin_b(k, H_DIM, H_DIM, (1,))
                            for k in jax.random.split(ks[5], N_BLOCKS)]),
        w_out=lin_w(ks[6], H_DIM, BODY_DIM),                  # [H, 93]
        b_out=lin_b(ks[7], H_DIM, BODY_DIM),                  # [1, 93]
    )
    return params


def prepare_params(params):
    """One-time prep (call OUTSIDE the jitted forward): pad body dim 93->128
    so the kernel's feedback matmul and output stores are lane-dense."""
    pp = dict(params)
    pp['w_xb'] = jnp.pad(params['w_xb'], ((0, BODY_PAD - BODY_DIM), (0, 0)))   # [128,H]
    pp['w_out'] = jnp.pad(params['w_out'], ((0, 0), (0, BODY_PAD - BODY_DIM)))  # [H,128]
    pp['b_out'] = jnp.pad(params['b_out'], ((0, 0), (0, BODY_PAD - BODY_DIM)))  # [1,128]
    return pp


def mosh_regressor_pallas(marker_ref, betas, pparams):
    """Wrapper: flatten markers, tile batch, call the fused kernel.

    `pparams` must come from prepare_params (pre-padded weights)."""
    b = marker_ref.shape[0]
    xr = marker_ref.reshape(b, IN_DIM).astype(jnp.float32)
    betas = betas.astype(jnp.float32)

    # batch tiling: large batches get TB=256 tiles (fills MXU M on v6e/v7x),
    # tiny batches degenerate to a single sublane-padded tile.
    if b >= 256:
        tb = 256
    else:
        tb = ((b + 7) // 8) * 8
    b_pad = ((b + tb - 1) // tb) * tb
    if b_pad != b:
        xr = jnp.pad(xr, ((0, b_pad - b), (0, 0)))
        betas = jnp.pad(betas, ((0, b_pad - b), (0, 0)))

    grid = (b_pad // tb,)

    out = pl.pallas_call(
        mosh_kernel,
        out_shape=jax.ShapeDtypeStruct((b_pad, BODY_PAD), jnp.float32),
        grid=grid,
        in_specs=[
            # batch-tiled activations
            pl.BlockSpec((tb, IN_DIM), lambda i: (i, 0)),                    # xr
            pl.BlockSpec((tb, BETA_DIM), lambda i: (i, 0)),                  # betas
            # VMEM-resident weights (constant block index across grid steps)
            pl.BlockSpec((IN_DIM, H_DIM), lambda i: (0, 0)),                 # w_xr
            pl.BlockSpec((BETA_DIM, H_DIM), lambda i: (0, 0)),               # w_bt
            pl.BlockSpec((1, H_DIM), lambda i: (0, 0)),                      # b_in
            pl.BlockSpec((BODY_PAD, H_DIM), lambda i: (0, 0)),               # w_xb
            pl.BlockSpec((N_BLOCKS, H_DIM, H_DIM), lambda i: (0, 0, 0)),     # w1
            pl.BlockSpec((N_BLOCKS, 1, H_DIM), lambda i: (0, 0, 0)),         # b1
            pl.BlockSpec((N_BLOCKS, H_DIM, H_DIM), lambda i: (0, 0, 0)),     # w2
            pl.BlockSpec((N_BLOCKS, 1, H_DIM), lambda i: (0, 0, 0)),         # b2
            pl.BlockSpec((H_DIM, BODY_PAD), lambda i: (0, 0)),               # w_out
            pl.BlockSpec((1, BODY_PAD), lambda i: (0, 0)),                   # b_out
        ],
        out_specs=pl.BlockSpec((tb, BODY_PAD), lambda i: (i, 0)),
        compiler_params=pltpu.CompilerParams(
            dimension_semantics=("parallel",)),  # shard batch tiles across TCs (v7x)
    )(xr, betas,
      pparams['w_xr'], pparams['w_bt'], pparams['b_in'], pparams['w_xb'],
      pparams['w1'], pparams['b1'], pparams['w2'], pparams['b2'],
      pparams['w_out'], pparams['b_out'])

    return out[:b, :BODY_DIM]


def mosh_regressor_ref(marker_ref, betas, params):
    """Pure-JAX reference mirroring the PyTorch forward exactly."""
    b = marker_ref.shape[0]
    xr = marker_ref.reshape(b, IN_DIM).astype(jnp.float32)
    betas = betas.astype(jnp.float32)
    w_in = jnp.concatenate([params['w_xr'], params['w_xb'], params['w_bt']], axis=0)
    xb = jnp.zeros((b, BODY_DIM), jnp.float32)
    for _ in range(N_RECUR):
        x = jnp.concatenate([xr, xb, betas], axis=-1)
        h = x @ w_in + params['b_in'][0]
        for blk in range(N_BLOCKS):
            t = jax.nn.relu(h @ params['w1'][blk] + params['b1'][blk, 0])
            t = jax.nn.relu(t @ params['w2'][blk] + params['b2'][blk, 0])
            h = t + h
        xb = h @ params['w_out'] + params['b_out'][0] + xb
    return xb
    # TODO(synk): use_cont=True branch (RotConverter.cont2aa) not exercised;
    # default config has use_cont=False so forward returns xb directly.


if __name__ == "__main__":
    key = jax.random.PRNGKey(0)
    k_param, k_marker, k_beta = jax.random.split(key, 3)

    B = 8
    params = init_params(k_param)
    pparams = prepare_params(params)                     # one-time weight pad
    marker_ref = jax.random.normal(k_marker, (B, NK, 3), jnp.float32)
    betas = jax.random.normal(k_beta, (B, BETA_DIM), jnp.float32)

    out = jax.jit(mosh_regressor_pallas)(marker_ref, betas, pparams)
    out = jax.block_until_ready(out)

    ref = mosh_regressor_ref(marker_ref, betas, params)
    assert out.shape == (B, BODY_DIM), out.shape
    assert jnp.allclose(out, ref, atol=1e-4, rtol=1e-4), float(jnp.max(jnp.abs(out - ref)))

    print("KERNEL_OK")
</pallas_src>

<mosaic_0001>
module attributes {stable_mosaic.version = 11 : i64} {
  func.func @mosh_kernel(%arg0: i32, %arg1: memref<8x201xf32, #tpu.memory_space<vmem>>, %arg2: memref<8x10xf32, #tpu.memory_space<vmem>>, %arg3: memref<201x32xf32, #tpu.memory_space<vmem>>, %arg4: memref<10x32xf32, #tpu.memory_space<vmem>>, %arg5: memref<1x32xf32, #tpu.memory_space<vmem>>, %arg6: memref<128x32xf32, #tpu.memory_space<vmem>>, %arg7: memref<2x32x32xf32, #tpu.memory_space<vmem>>, %arg8: memref<2x1x32xf32, #tpu.memory_space<vmem>>, %arg9: memref<2x32x32xf32, #tpu.memory_space<vmem>>, %arg10: memref<2x1x32xf32, #tpu.memory_space<vmem>>, %arg11: memref<32x128xf32, #tpu.memory_space<vmem>>, %arg12: memref<1x128xf32, #tpu.memory_space<vmem>>, %arg13: memref<8x128xf32, #tpu.memory_space<vmem>>) attributes {dimension_semantics = [#tpu.dimension_semantics<parallel>], iteration_bounds = array<i64: 1>, scalar_prefetch = 0 : i64, scratch_operands = 0 : i64, tpu.core_type = #tpu.core_type<tc>, window_params = [{transform_indices = @transform_0, window_bounds = array<i64: 8, 201>}, {transform_indices = @transform_1, window_bounds = array<i64: 8, 10>}, {pipeline_mode = #tpu.pipeline_mode<synchronous>, transform_indices = @transform_2, window_bounds = array<i64: 201, 32>}, {pipeline_mode = #tpu.pipeline_mode<synchronous>, transform_indices = @transform_3, window_bounds = array<i64: 10, 32>}, {pipeline_mode = #tpu.pipeline_mode<synchronous>, transform_indices = @transform_4, window_bounds = array<i64: 1, 32>}, {pipeline_mode = #tpu.pipeline_mode<synchronous>, transform_indices = @transform_5, window_bounds = array<i64: 128, 32>}, {pipeline_mode = #tpu.pipeline_mode<synchronous>, transform_indices = @transform_6, window_bounds = array<i64: 2, 32, 32>}, {pipeline_mode = #tpu.pipeline_mode<synchronous>, transform_indices = @transform_7, window_bounds = array<i64: 2, 1, 32>}, {pipeline_mode = #tpu.pipeline_mode<synchronous>, transform_indices = @transform_8, window_bounds = array<i64: 2, 32, 32>}, {pipeline_mode = #tpu.pipeline_mode<synchronous>, transform_indices = @transform_9, window_bounds = array<i64: 2, 1, 32>}, {pipeline_mode = #tpu.pipeline_mode<synchronous>, transform_indices = @transform_10, window_bounds = array<i64: 32, 128>}, {pipeline_mode = #tpu.pipeline_mode<synchronous>, transform_indices = @transform_11, window_bounds = array<i64: 1, 128>}, {transform_indices = @transform_12, window_bounds = array<i64: 8, 128>}]} {
    %c0 = arith.constant 0 : index
    %c0_0 = arith.constant 0 : index
    %0 = vector.load %arg1[%c0, %c0_0] : memref<8x201xf32, #tpu.memory_space<vmem>>, vector<8x201xf32>
    %c0_1 = arith.constant 0 : index
    %c0_2 = arith.constant 0 : index
    %1 = vector.load %arg3[%c0_1, %c0_2] : memref<201x32xf32, #tpu.memory_space<vmem>>, vector<201x32xf32>
    %cst = arith.constant dense<0.000000e+00> : vector<8x32xf32>
    %2 = tpu.matmul %0, %1, %cst {dimension_numbers = #tpu.dot_dimension_numbers<[1], [0], [0], [1], [0, 0, 1, 1], [], []>} : vector<8x201xf32>, vector<201x32xf32>, vector<8x32xf32> -> vector<8x32xf32>
    %c0_3 = arith.constant 0 : index
    %c0_4 = arith.constant 0 : index
    %3 = vector.load %arg2[%c0_3, %c0_4] : memref<8x10xf32, #tpu.memory_space<vmem>>, vector<8x10xf32>
    %c0_5 = arith.constant 0 : index
    %c0_6 = arith.constant 0 : index
    %4 = vector.load %arg4[%c0_5, %c0_6] : memref<10x32xf32, #tpu.memory_space<vmem>>, vector<10x32xf32>
    %cst_7 = arith.constant dense<0.000000e+00> : vector<8x32xf32>
    %5 = tpu.matmul %3, %4, %cst_7 {dimension_numbers = #tpu.dot_dimension_numbers<[1], [0], [0], [1], [0, 0, 1, 1], [], []>} : vector<8x10xf32>, vector<10x32xf32>, vector<8x32xf32> -> vector<8x32xf32>
    %6 = arith.addf %2, %5 : vector<8x32xf32>
    %c0_8 = arith.constant 0 : index
    %c0_9 = arith.constant 0 : index
    %7 = vector.load %arg5[%c0_8, %c0_9] : memref<1x32xf32, #tpu.memory_space<vmem>>, vector<1x32xf32>
    %8 = vector.broadcast %7 : vector<1x32xf32> to vector<8x32xf32>
    %9 = arith.addf %6, %8 : vector<8x32xf32>
    %c0_10 = arith.constant 0 : index
    %c0_11 = arith.constant 0 : index
    %10 = vector.load %arg6[%c0_10, %c0_11] : memref<128x32xf32, #tpu.memory_space<vmem>>, vector<128x32xf32>
    %c0_12 = arith.constant 0 : index
    %c0_13 = arith.constant 0 : index
    %11 = vector.load %arg11[%c0_12, %c0_13] : memref<32x128xf32, #tpu.memory_space<vmem>>, vector<32x128xf32>
    %c0_14 = arith.constant 0 : index
    %c0_15 = arith.constant 0 : index
    %12 = vector.load %arg12[%c0_14, %c0_15] : memref<1x128xf32, #tpu.memory_space<vmem>>, vector<1x128xf32>
    %c0_16 = arith.constant 0 : index
    %c0_17 = arith.constant 0 : index
    %c0_18 = arith.constant 0 : index
    %13 = vector.load %arg7[%c0_16, %c0_17, %c0_18] : memref<2x32x32xf32, #tpu.memory_space<vmem>>, vector<1x32x32xf32>
    %14 = vector.shape_cast %13 : vector<1x32x32xf32> to vector<32x32xf32>
    %c1 = arith.constant 1 : index
    %c0_19 = arith.constant 0 : index
    %c0_20 = arith.constant 0 : index
    %15 = vector.load %arg7[%c1, %c0_19, %c0_20] : memref<2x32x32xf32, #tpu.memory_space<vmem>>, vector<1x32x32xf32>
    %16 = vector.shape_cast %15 : vector<1x32x32xf32> to vector<32x32xf32>
    %c0_21 = arith.constant 0 : index
    %c0_22 = arith.constant 0 : index
    %c0_23 = arith.constant 0 : index
    %17 = vector.load %arg8[%c0_21, %c0_22, %c0_23] : memref<2x1x32xf32, #tpu.memory_space<vmem>>, vector<1x1x32xf32>
    %18 = vector.shape_cast %17 : vector<1x1x32xf32> to vector<1x32xf32>
    %c1_24 = arith.constant 1 : index
    %c0_25 = arith.constant 0 : index
    %c0_26 = arith.constant 0 : index
    %19 = vector.load %arg8[%c1_24, %c0_25, %c0_26] : memref<2x1x32xf32, #tpu.memory_space<vmem>>, vector<1x1x32xf32>
    %20 = vector.shape_cast %19 : vector<1x1x32xf32> to vector<1x32xf32>
    %c0_27 = arith.constant 0 : index
    %c0_28 = arith.constant 0 : index
    %c0_29 = arith.constant 0 : index
    %21 = vector.load %arg9[%c0_27, %c0_28, %c0_29] : memref<2x32x32xf32, #tpu.memory_space<vmem>>, vector<1x32x32xf32>
    %22 = vector.shape_cast %21 : vector<1x32x32xf32> to vector<32x32xf32>
    %c1_30 = arith.constant 1 : index
    %c0_31 = arith.constant 0 : index
    %c0_32 = arith.constant 0 : index
    %23 = vector.load %arg9[%c1_30, %c0_31, %c0_32] : memref<2x32x32xf32, #tpu.memory_space<vmem>>, vector<1x32x32xf32>
    %24 = vector.shape_cast %23 : vector<1x32x32xf32> to vector<32x32xf32>
    %c0_33 = arith.constant 0 : index
    %c0_34 = arith.constant 0 : index
    %c0_35 = arith.constant 0 : index
    %25 = vector.load %arg10[%c0_33, %c0_34, %c0_35] : memref<2x1x32xf32, #tpu.memory_space<vmem>>, vector<1x1x32xf32>
    %26 = vector.shape_cast %25 : vector<1x1x32xf32> to vector<1x32xf32>
    %c1_36 = arith.constant 1 : index
    %c0_37 = arith.constant 0 : index
    %c0_38 = arith.constant 0 : index
    %27 = vector.load %arg10[%c1_36, %c0_37, %c0_38] : memref<2x1x32xf32, #tpu.memory_space<vmem>>, vector<1x1x32xf32>
    %28 = vector.shape_cast %27 : vector<1x1x32xf32> to vector<1x32xf32>
    %cst_39 = arith.constant dense<0.000000e+00> : vector<8x32xf32>
    %29 = tpu.matmul %9, %14, %cst_39 {dimension_numbers = #tpu.dot_dimension_numbers<[1], [0], [0], [1], [0, 0, 1, 1], [], []>} : vector<8x32xf32>, vector<32x32xf32>, vector<8x32xf32> -> vector<8x32xf32>
    %30 = vector.broadcast %18 : vector<1x32xf32> to vector<8x32xf32>
    %31 = arith.addf %29, %30 : vector<8x32xf32>
    %cst_40 = arith.constant 0.000000e+00 : f32
    %32 = vector.broadcast %cst_40 : f32 to vector<8x32xf32>
    %33 = arith.maximumf %31, %32 : vector<8x32xf32>
    %cst_41 = arith.constant dense<0.000000e+00> : vector<8x32xf32>
    %34 = tpu.matmul %33, %22, %cst_41 {dimension_numbers = #tpu.dot_dimension_numbers<[1], [0], [0], [1], [0, 0, 1, 1], [], []>} : vector<8x32xf32>, vector<32x32xf32>, vector<8x32xf32> -> vector<8x32xf32>
    %35 = vector.broadcast %26 : vector<1x32xf32> to vector<8x32xf32>
    %36 = arith.addf %34, %35 : vector<8x32xf32>
    %cst_42 = arith.constant 0.000000e+00 : f32
    %37 = vector.broadcast %cst_42 : f32 to vector<8x32xf32>
    %38 = arith.maximumf %36, %37 : vector<8x32xf32>
    %39 = arith.addf %38, %9 : vector<8x32xf32>
    %cst_43 = arith.constant dense<0.000000e+00> : vector<8x32xf32>
    %40 = tpu.matmul %39, %16, %cst_43 {dimension_numbers = #tpu.dot_dimension_numbers<[1], [0], [0], [1], [0, 0, 1, 1], [], []>} : vector<8x32xf32>, vector<32x32xf32>, vector<8x32xf32> -> vector<8x32xf32>
    %41 = vector.broadcast %20 : vector<1x32xf32> to vector<8x32xf32>
    %42 = arith.addf %40, %41 : vector<8x32xf32>
    %cst_44 = arith.constant 0.000000e+00 : f32
    %43 = vector.broadcast %cst_44 : f32 to vector<8x32xf32>
    %44 = arith.maximumf %42, %43 : vector<8x32xf32>
    %cst_45 = arith.constant dense<0.000000e+00> : vector<8x32xf32>
    %45 = tpu.matmul %44, %24, %cst_45 {dimension_numbers = #tpu.dot_dimension_numbers<[1], [0], [0], [1], [0, 0, 1, 1], [], []>} : vector<8x32xf32>, vector<32x32xf32>, vector<8x32xf32> -> vector<8x32xf32>
    %46 = vector.broadcast %28 : vector<1x32xf32> to vector<8x32xf32>
    %47 = arith.addf %45, %46 : vector<8x32xf32>
    %cst_46 = arith.constant 0.000000e+00 : f32
    %48 = vector.broadcast %cst_46 : f32 to vector<8x32xf32>
    %49 = arith.maximumf %47, %48 : vector<8x32xf32>
    %50 = arith.addf %49, %39 : vector<8x32xf32>
    %cst_47 = arith.constant dense<0.000000e+00> : vector<8x128xf32>
    %51 = tpu.matmul %50, %11, %cst_47 {dimension_numbers = #tpu.dot_dimension_numbers<[1], [0], [0], [1], [0, 0, 1, 1], [], []>} : vector<8x32xf32>, vector<32x128xf32>, vector<8x128xf32> -> vector<8x128xf32>
    %52 = vector.broadcast %12 : vector<1x128xf32> to vector<8x128xf32>
    %53 = arith.addf %51, %52 : vector<8x128xf32>
    %cst_48 = arith.constant dense<0.000000e+00> : vector<8x32xf32>
    %54 = tpu.matmul %53, %10, %cst_48 {dimension_numbers = #tpu.dot_dimension_numbers<[1], [0], [0], [1], [0, 0, 1, 1], [], []>} : vector<8x128xf32>, vector<128x32xf32>, vector<8x32xf32> -> vector<8x32xf32>
    %55 = arith.addf %9, %54 : vector<8x32xf32>
    %cst_49 = arith.constant dense<0.000000e+00> : vector<8x32xf32>
    %56 = tpu.matmul %55, %14, %cst_49 {dimension_numbers = #tpu.dot_dimension_numbers<[1], [0], [0], [1], [0, 0, 1, 1], [], []>} : vector<8x32xf32>, vector<32x32xf32>, vector<8x32xf32> -> vector<8x32xf32>
    %57 = vector.broadcast %18 : vector<1x32xf32> to vector<8x32xf32>
    %58 = arith.addf %56, %57 : vector<8x32xf32>
    %cst_50 = arith.constant 0.000000e+00 : f32
    %59 = vector.broadcast %cst_50 : f32 to vector<8x32xf32>
    %60 = arith.maximumf %58, %59 : vector<8x32xf32>
    %cst_51 = arith.constant dense<0.000000e+00> : vector<8x32xf32>
    %61 = tpu.matmul %60, %22, %cst_51 {dimension_numbers = #tpu.dot_dimension_numbers<[1], [0], [0], [1], [0, 0, 1, 1], [], []>} : vector<8x32xf32>, vector<32x32xf32>, vector<8x32xf32> -> vector<8x32xf32>
    %62 = vector.broadcast %26 : vector<1x32xf32> to vector<8x32xf32>
    %63 = arith.addf %61, %62 : vector<8x32xf32>
    %cst_52 = arith.constant 0.000000e+00 : f32
    %64 = vector.broadcast %cst_52 : f32 to vector<8x32xf32>
    %65 = arith.maximumf %63, %64 : vector<8x32xf32>
    %66 = arith.addf %65, %55 : vector<8x32xf32>
    %cst_53 = arith.constant dense<0.000000e+00> : vector<8x32xf32>
    %67 = tpu.matmul %66, %16, %cst_53 {dimension_numbers = #tpu.dot_dimension_numbers<[1], [0], [0], [1], [0, 0, 1, 1], [], []>} : vector<8x32xf32>, vector<32x32xf32>, vector<8x32xf32> -> vector<8x32xf32>
    %68 = vector.broadcast %20 : vector<1x32xf32> to vector<8x32xf32>
    %69 = arith.addf %67, %68 : vector<8x32xf32>
    %cst_54 = arith.constant 0.000000e+00 : f32
    %70 = vector.broadcast %cst_54 : f32 to vector<8x32xf32>
    %71 = arith.maximumf %69, %70 : vector<8x32xf32>
    %cst_55 = arith.constant dense<0.000000e+00> : vector<8x32xf32>
    %72 = tpu.matmul %71, %24, %cst_55 {dimension_numbers = #tpu.dot_dimension_numbers<[1], [0], [0], [1], [0, 0, 1, 1], [], []>} : vector<8x32xf32>, vector<32x32xf32>, vector<8x32xf32> -> vector<8x32xf32>
    %73 = vector.broadcast %28 : vector<1x32xf32> to vector<8x32xf32>
    %74 = arith.addf %72, %73 : vector<8x32xf32>
    %cst_56 = arith.constant 0.000000e+00 : f32
    %75 = vector.broadcast %cst_56 : f32 to vector<8x32xf32>
    %76 = arith.maximumf %74, %75 : vector<8x32xf32>
    %77 = arith.addf %76, %66 : vector<8x32xf32>
    %cst_57 = arith.constant dense<0.000000e+00> : vector<8x128xf32>
    %78 = tpu.matmul %77, %11, %cst_57 {dimension_numbers = #tpu.dot_dimension_numbers<[1], [0], [0], [1], [0, 0, 1, 1], [], []>} : vector<8x32xf32>, vector<32x128xf32>, vector<8x128xf32> -> vector<8x128xf32>
    %79 = vector.broadcast %12 : vector<1x128xf32> to vector<8x128xf32>
    %80 = arith.addf %78, %79 : vector<8x128xf32>
    %81 = arith.addf %80, %53 : vector<8x128xf32>
    %c0_58 = arith.constant 0 : index
    %c0_59 = arith.constant 0 : index
    %82 = vector.load %arg13[%c0_58, %c0_59] : memref<8x128xf32, #tpu.memory_space<vmem>>, vector<8x128xf32>
    tpu.vector_store %arg13[%c0_58, %c0_59], %81 {strides = array<i32>} : memref<8x128xf32, #tpu.memory_space<vmem>>, vector<8x128xf32>,
    return
  }
  func.func @transform_0(%arg0: i32) -> (i32, i32) {
    %c0_i32 = arith.constant 0 : i32
    %c0_i32_0 = arith.constant 0 : i32
    return %arg0, %c0_i32 : i32, i32
  }
  func.func @transform_1(%arg0: i32) -> (i32, i32) {
    %c0_i32 = arith.constant 0 : i32
    %c0_i32_0 = arith.constant 0 : i32
    return %arg0, %c0_i32 : i32, i32
  }
  func.func @transform_2(%arg0: i32) -> (i32, i32) {
    %c0_i32 = arith.constant 0 : i32
    %c0_i32_0 = arith.constant 0 : i32
    %c0_i32_1 = arith.constant 0 : i32
    return %c0_i32, %c0_i32_0 : i32, i32
  }
  func.func @transform_3(%arg0: i32) -> (i32, i32) {
    %c0_i32 = arith.constant 0 : i32
    %c0_i32_0 = arith.constant 0 : i32
    %c0_i32_1 = arith.constant 0 : i32
    return %c0_i32, %c0_i32_0 : i32, i32
  }
  func.func @transform_4(%arg0: i32) -> (i32, i32) {
    %c0_i32 = arith.constant 0 : i32
    %c0_i32_0 = arith.constant 0 : i32
    %c0_i32_1 = arith.constant 0 : i32
    return %c0_i32, %c0_i32_0 : i32, i32
  }
  func.func @transform_5(%arg0: i32) -> (i32, i32) {
    %c0_i32 = arith.constant 0 : i32
    %c0_i32_0 = arith.constant 0 : i32
    %c0_i32_1 = arith.constant 0 : i32
    return %c0_i32, %c0_i32_0 : i32, i32
  }
  func.func @transform_6(%arg0: i32) -> (i32, i32, i32) {
    %c0_i32 = arith.constant 0 : i32
    %c0_i32_0 = arith.constant 0 : i32
    %c0_i32_1 = arith.constant 0 : i32
    %c0_i32_2 = arith.constant 0 : i32
    return %c0_i32, %c0_i32_0, %c0_i32_1 : i32, i32, i32
  }
  func.func @transform_7(%arg0: i32) -> (i32, i32, i32) {
    %c0_i32 = arith.constant 0 : i32
    %c0_i32_0 = arith.constant 0 : i32
    %c0_i32_1 = arith.constant 0 : i32
    %c0_i32_2 = arith.constant 0 : i32
    return %c0_i32, %c0_i32_0, %c0_i32_1 : i32, i32, i32
  }
  func.func @transform_8(%arg0: i32) -> (i32, i32, i32) {
    %c0_i32 = arith.constant 0 : i32
    %c0_i32_0 = arith.constant 0 : i32
    %c0_i32_1 = arith.constant 0 : i32
    %c0_i32_2 = arith.constant 0 : i32
    return %c0_i32, %c0_i32_0, %c0_i32_1 : i32, i32, i32
  }
  func.func @transform_9(%arg0: i32) -> (i32, i32, i32) {
    %c0_i32 = arith.constant 0 : i32
    %c0_i32_0 = arith.constant 0 : i32
    %c0_i32_1 = arith.constant 0 : i32
    %c0_i32_2 = arith.constant 0 : i32
    return %c0_i32, %c0_i32_0, %c0_i32_1 : i32, i32, i32
  }
  func.func @transform_10(%arg0: i32) -> (i32, i32) {
    %c0_i32 = arith.constant 0 : i32
    %c0_i32_0 = arith.constant 0 : i32
    %c0_i32_1 = arith.constant 0 : i32
    return %c0_i32, %c0_i32_0 : i32, i32
  }
  func.func @transform_11(%arg0: i32) -> (i32, i32) {
    %c0_i32 = arith.constant 0 : i32
    %c0_i32_0 = arith.constant 0 : i32
    %c0_i32_1 = arith.constant 0 : i32
    return %c0_i32, %c0_i32_0 : i32, i32
  }
  func.func @transform_12(%arg0: i32) -> (i32, i32) {
    %c0_i32 = arith.constant 0 : i32
    %c0_i32_0 = arith.constant 0 : i32
    return %arg0, %c0_i32 : i32, i32
  }
}

</mosaic_0001>

<llo_original>
// kernel: mosh_regressor_pallas.1
$region0: #{mosh_regressor_pallas.1}
  #allocation0 [shape = 'u32[]', space=smem, size = 0x4, offset = 0x4, fixed_abs, tag = 'smem constant byte address 0x4 - core index']
  #allocation1 [shape = 'u32[144,128]{1,0:T(1,128)}', space=vmem, size = 0x12000, scoped, tag = 'internal scratch']
  %s0 = inlined_call_operand.vmem [shape: f32[8,201], index: 0, kind: input, shape index: {}]
  %s1 = inlined_call_operand.vmem [shape: f32[8,10], index: 1, kind: input, shape index: {}]
  %s2 = inlined_call_operand.vmem [shape: f32[201,32], index: 2, kind: input, shape index: {}]
  %s3 = inlined_call_operand.vmem [shape: f32[10,32], index: 3, kind: input, shape index: {}]
  %s4 = inlined_call_operand.vmem [shape: f32[1,32], index: 4, kind: input, shape index: {}]
  %s5 = inlined_call_operand.vmem [shape: f32[128,32], index: 5, kind: input, shape index: {}]
  %s6 = inlined_call_operand.vmem [shape: f32[2,32,32], index: 6, kind: input, shape index: {}]
  %s7 = inlined_call_operand.vmem [shape: f32[2,1,32], index: 7, kind: input, shape index: {}]
  %s8 = inlined_call_operand.vmem [shape: f32[2,32,32], index: 8, kind: input, shape index: {}]
  %s9 = inlined_call_operand.vmem [shape: f32[2,1,32], index: 9, kind: input, shape index: {}]
  %s10 = inlined_call_operand.vmem [shape: f32[32,128], index: 10, kind: input, shape index: {}]
  %s11 = inlined_call_operand.vmem [shape: f32[1,128], index: 11, kind: input, shape index: {}]
  %s12 = inlined_call_operand.hbm [shape: f32[8,128], index: 12, kind: output, shape index: {}]
  %s13 = sld [smem:[#allocation0]]
  $region58: #{mosh_regressor_pallas.1} parent=0
    _
  %s15 = ssub.s32 1, %s13
  %s16 = scalar_select 0, %s15, %s13
  $region1: #{mosh_regressor_pallas.1} parent=0
    #allocation2 [shape = 'u8[4096]{0}', space=vmem, size = 0x1000, scoped, tag = 'output window, operand 0, single buffered']
    #allocation3 [shape = 's32[1]{0}', space=sflag, size = 0x4, scoped, tag = 'scoped memory for mosh_regressor_pallas.1']
    %17 = vsyncpa [#allocation3], 0
    // Predicated region
    $region2: #{mosh_regressor_pallas.1} parent=1 // pred_check
      _
    $region3: #{mosh_regressor_pallas.1} parent=1 // pred_check_branch
      %19 = sbr.rel (0) target = $region5
    $region4: #{mosh_regressor_pallas.1} parent=1 // pred_region
      _
    $region5: #{mosh_regressor_pallas.1} parent=1 // pred_fallthru
      _
    // Predicated region
    $region6: #{mosh_regressor_pallas.1} parent=1 // pred_check
      _
    $region7: #{mosh_regressor_pallas.1} parent=1 // pred_check_branch
      %21 = sbr.rel (0) target = $region9
    $region8: #{mosh_regressor_pallas.1} parent=1 // pred_region
      _
    $region9: #{mosh_regressor_pallas.1} parent=1 // pred_fallthru
      _
    // Predicated region
    $region10: #{mosh_regressor_pallas.1} parent=1 // pred_check
      _
    $region11: #{mosh_regressor_pallas.1} parent=1 // pred_check_branch
      %23 = sbr.rel (0) target = $region13
    $region12: #{mosh_regressor_pallas.1} parent=1 // pred_region
      _
    $region13: #{mosh_regressor_pallas.1} parent=1 // pred_fallthru
      _
    // Predicated region
    $region14: #{mosh_regressor_pallas.1} parent=1 // pred_check
      _
    $region15: #{mosh_regressor_pallas.1} parent=1 // pred_check_branch
      %25 = sbr.rel (0) target = $region17
    $region16: #{mosh_regressor_pallas.1} parent=1 // pred_region
      _
    $region17: #{mosh_regressor_pallas.1} parent=1 // pred_fallthru
      _
    // Predicated region
    $region18: #{mosh_regressor_pallas.1} parent=1 // pred_check
      _
    $region19: #{mosh_regressor_pallas.1} parent=1 // pred_check_branch
      %27 = sbr.rel (0) target = $region21
    $region20: #{mosh_regressor_pallas.1} parent=1 // pred_region
      _
    $region21: #{mosh_regressor_pallas.1} parent=1 // pred_fallthru
      _
    // Predicated region
    $region22: #{mosh_regressor_pallas.1} parent=1 // pred_check
      _
    $region23: #{mosh_regressor_pallas.1} parent=1 // pred_check_branch
      %29 = sbr.rel (0) target = $region25
    $region24: #{mosh_regressor_pallas.1} parent=1 // pred_region
      _
    $region25: #{mosh_regressor_pallas.1} parent=1 // pred_fallthru
      _
    // Predicated region
    $region26: #{mosh_regressor_pallas.1} parent=1 // pred_check
      _
    $region27: #{mosh_regressor_pallas.1} parent=1 // pred_check_branch
      %31 = sbr.rel (0) target = $region29
    $region28: #{mosh_regressor_pallas.1} parent=1 // pred_region
      _
    $region29: #{mosh_regressor_pallas.1} parent=1 // pred_fallthru
      _
    // Predicated region
    $region30: #{mosh_regressor_pallas.1} parent=1 // pred_check
      _
    $region31: #{mosh_regressor_pallas.1} parent=1 // pred_check_branch
      %33 = sbr.rel (0) target = $region33
    $region32: #{mosh_regressor_pallas.1} parent=1 // pred_region
      _
    $region33: #{mosh_regressor_pallas.1} parent=1 // pred_fallthru
      _
    // Predicated region
    $region34: #{mosh_regressor_pallas.1} parent=1 // pred_check
      _
    $region35: #{mosh_regressor_pallas.1} parent=1 // pred_check_branch
      %35 = sbr.rel (0) target = $region37
    $region36: #{mosh_regressor_pallas.1} parent=1 // pred_region
      _
    $region37: #{mosh_regressor_pallas.1} parent=1 // pred_fallthru
      _
    // Predicated region
    $region38: #{mosh_regressor_pallas.1} parent=1 // pred_check
      _
    $region39: #{mosh_regressor_pallas.1} parent=1 // pred_check_branch
      %37 = sbr.rel (0) target = $region41
    $region40: #{mosh_regressor_pallas.1} parent=1 // pred_region
      _
    $region41: #{mosh_regressor_pallas.1} parent=1 // pred_fallthru
      _
    // Predicated region
    $region42: #{mosh_regressor_pallas.1} parent=1 // pred_check
      _
    $region43: #{mosh_regressor_pallas.1} parent=1 // pred_check_branch
      %39 = sbr.rel (0) target = $region45
    $region44: #{mosh_regressor_pallas.1} parent=1 // pred_region
      _
    $region45: #{mosh_regressor_pallas.1} parent=1 // pred_fallthru
      _
    // Predicated region
    $region46: #{mosh_regressor_pallas.1} parent=1 // pred_check
      _
    $region47: #{mosh_regressor_pallas.1} parent=1 // pred_check_branch
      %41 = sbr.rel (0) target = $region49
    $region48: #{mosh_regressor_pallas.1} parent=1 // pred_region
      _
    $region49: #{mosh_regressor_pallas.1} parent=1 // pred_fallthru
      _
    %v42 = vld [vmem:[%s0] sm:$0xff]
    %v43 = vld [vmem:[%s0 + $0x8] sm:$0xff]
    %v44 = vld [vmem:[%s2] sm:$0xff]
    %v45 = vld [vmem:[%s2 + $0x8] sm:$0xff]
    %v46 = vld [vmem:[%s2 + $0x10] sm:$0xff]
    %v47 = vld [vmem:[%s2 + $0x18] sm:$0xff]
    %v48 = vld [vmem:[%s2 + $0x20] sm:$0xff]
    %v49 = vld [vmem:[%s2 + $0x28] sm:$0xff]
    %v50 = vld [vmem:[%s2 + $0x30] sm:$0xff]
    %v51 = vld [vmem:[%s2 + $0x38] sm:$0xff]
    %v52 = vld [vmem:[%s2 + $0x40] sm:$0xff]
    %v53 = vld [vmem:[%s2 + $0x48] sm:$0xff]
    %v54 = vld [vmem:[%s2 + $0x50] sm:$0xff]
    %v55 = vld [vmem:[%s2 + $0x58] sm:$0xff]
    %v56 = vld [vmem:[%s2 + $0x60] sm:$0xff]
    %v57 = vld [vmem:[%s2 + $0x68] sm:$0xff]
    %v58 = vld [vmem:[%s2 + $0x70] sm:$0xff]
    %v59 = vld [vmem:[%s2 + $0x78] sm:$0xff]
    %v60 = vld [vmem:[%s2 + $0x80] sm:$0xff]
    %v61 = vld [vmem:[%s2 + $0x88] sm:$0xff]
    %v62 = vld [vmem:[%s2 + $0x90] sm:$0xff]
    %v63 = vld [vmem:[%s2 + $0x98] sm:$0xff]
    %v64 = vld [vmem:[%s2 + $0xa0] sm:$0xff]
    %v65 = vld [vmem:[%s2 + $0xa8] sm:$0xff]
    %v66 = vld [vmem:[%s2 + $0xb0] sm:$0xff]
    %v67 = vld [vmem:[%s2 + $0xb8] sm:$0xff]
    %v68 = vld [vmem:[%s2 + $0xc0] sm:$0xff]
    %v69 = vld [vmem:[%s2 + $0xc8] sm:$0x1]
    %v70 = vld [vmem:[%s1] sm:$0xff]
    %v71 = vld [vmem:[%s3] sm:$0xff]
    %v72 = vld [vmem:[%s3 + $0x8] sm:$0x3]
    %vm73 = vcmask 80896
    %v75 = vsel %vm73, %v70, 0
    %vm77 = vcmask 1041408
    %v79 = vsel %vm77, %v72, 0
    %81 = vmatprep.subr.mxu0 0.0
    %82 = vmatpush1.msra.mxu0 0.0
    %83 = vmatprep.subr.mxu0 0.0
    %84 = vmatpush1.msra.mxu0 0.0
    %85 = vmatprep.subr.mxu0 0.0
    %86 = vmatpush1.msra.mxu0 0.0
    %87 = vmatprep.subr.mxu0 0.0
    %88 = vmatpush1.msra.mxu0 0.0
    %89 = vmatprep.subr.mxu0 0.0
    %90 = vmatpush1.msra.mxu0 0.0
    %91 = vmatprep.subr.mxu0 0.0
    %92 = vmatpush1.msra.mxu0 0.0
    %93 = vmatprep.subr.mxu0 0.0
    %94 = vmatpush1.msra.mxu0 0.0
    %95 = vmatprep.subr.mxu0 0.0
    %96 = vmatpush1.msra.mxu0 0.0
    %97 = vmatprep.subr.mxu0 0.0
    %98 = vmatpush1.msra.mxu0 0.0
    %99 = vmatprep.subr.mxu0 0.0
    %100 = vmatpush1.msra.mxu0 0.0
    %101 = vmatprep.subr.mxu0 0.0
    %102 = vmatpush1.msra.mxu0 0.0
    %103 = vmatprep.subr.mxu0 0.0
    %104 = vmatpush1.msra.mxu0 0.0
    %105 = vmatprep.subr.mxu0 0.0
    %106 = vmatpush1.msra.mxu0 0.0
    %107 = vmatprep.subr.mxu0 0.0
    %108 = vmatpush1.msra.mxu0 0.0
    %109 = vmatprep.subr.mxu0 0.0
    %110 = vmatpush1.msra.mxu0 %v79
    %111 = vmatprep.subr.mxu0 0.0
    %112 = vmatpush1.msra.mxu0 %v71
    %113 = vmatprep.subr.mxu0 0.0
    %114 = vmatpush2.msra.mxu0 0.0
    %115 = vmatprep.subr.mxu0 0.0
    %116 = vmatpush2.msra.mxu0 0.0
    %117 = vmatprep.subr.mxu0 0.0
    %118 = vmatpush2.msra.mxu0 0.0
    %119 = vmatprep.subr.mxu0 0.0
    %120 = vmatpush2.msra.mxu0 0.0
    %121 = vmatprep.subr.mxu0 0.0
    %122 = vmatpush2.msra.mxu0 0.0
    %123 = vmatprep.subr.mxu0 0.0
    %124 = vmatpush2.msra.mxu0 0.0
    %125 = vmatprep.subr.mxu0 0.0
    %126 = vmatpush2.msra.mxu0 0.0
    %127 = vmatprep.subr.mxu0 0.0
    %128 = vmatpush2.msra.mxu0 0.0
    %129 = vmatprep.subr.mxu0 0.0
    %130 = vmatpush2.msra.mxu0 0.0
    %131 = vmatprep.subr.mxu0 0.0
    %132 = vmatpush2.msra.mxu0 0.0
    %133 = vmatprep.subr.mxu0 0.0
    %134 = vmatpush2.msra.mxu0 0.0
    %135 = vmatprep.subr.mxu0 0.0
    %136 = vmatpush2.msra.mxu0 0.0
    %137 = vmatprep.subr.mxu0 0.0
    %138 = vmatpush2.msra.mxu0 0.0
    %139 = vmatprep.subr.mxu0 0.0
    %140 = vmatpush2.msra.mxu0 0.0
    %141 = vmatprep.subr.mxu0 0.0
    %142 = vmatpush2.msra.mxu0 0.0
    %143 = vmatprep.subr.mxu0 0.0
    %144 = vmatpush2.msra.mxu0 0.0
    %145 = vmatprep.mubr.f32.mxu0 0.0
    %146 = vmatmul.mubr.f32.gmra.mxu0 %v75
    %v147 = vpop.f32.mrf.mxu0
    %v148 = vadd.f32 0.0, %v147
    %v149 = vpop.f32.mrf.mxu0
    %150 = vdwg.mxu0
    %vm151 = vcmask 596992
    %v153 = vsel %vm151, %v43, 0
    %vm155 = vcmask 1040384
    %v157 = vsel %vm155, %v69, 0
    %159 = vmatprep.subr.mxu0 0.0
    %160 = vmatpush1.msra.mxu0 %v59
    %161 = vmatprep.subr.mxu0 0.0
    %162 = vmatpush1.msra.mxu0 %v58
    %163 = vmatprep.subr.mxu0 0.0
    %164 = vmatpush1.msra.mxu0 %v57
    %165 = vmatprep.subr.mxu0 0.0
    %166 = vmatpush1.msra.mxu0 %v56
    %167 = vmatprep.subr.mxu0 0.0
    %168 = vmatpush1.msra.mxu0 %v55
    %169 = vmatprep.subr.mxu0 0.0
    %170 = vmatpush1.msra.mxu0 %v54
    %171 = vmatprep.subr.mxu0 0.0
    %172 = vmatpush1.msra.mxu0 %v53
    %173 = vmatprep.subr.mxu0 0.0
    %174 = vmatpush1.msra.mxu0 %v52
    %175 = vmatprep.subr.mxu0 0.0
    %176 = vmatpush1.msra.mxu0 %v51
    %177 = vmatprep.subr.mxu0 0.0
    %178 = vmatpush1.msra.mxu0 %v50
    %179 = vmatprep.subr.mxu0 0.0
    %180 = vmatpush1.msra.mxu0 %v49
    %181 = vmatprep.subr.mxu0 0.0
    %182 = vmatpush1.msra.mxu0 %v48
    %183 = vmatprep.subr.mxu0 0.0
    %184 = vmatpush1.msra.mxu0 %v47
    %185 = vmatprep.subr.mxu0 0.0
    %186 = vmatpush1.msra.mxu0 %v46
    %187 = vmatprep.subr.mxu0 0.0
    %188 = vmatpush1.msra.mxu0 %v45
    %189 = vmatprep.subr.mxu0 0.0
    %190 = vmatpush1.msra.mxu0 %v44
    %191 = vmatprep.subr.mxu0 0.0
    %192 = vmatpush2.msra.mxu0 0.0
    %193 = vmatprep.subr.mxu0 0.0
    %194 = vmatpush2.msra.mxu0 0.0
    %195 = vmatprep.subr.mxu0 0.0
    %196 = vmatpush2.msra.mxu0 0.0
    %197 = vmatprep.subr.mxu0 0.0
    %198 = vmatpush2.msra.mxu0 0.0
    %199 = vmatprep.subr.mxu0 0.0
    %200 = vmatpush2.msra.mxu0 0.0
    %201 = vmatprep.subr.mxu0 0.0
    %202 = vmatpush2.msra.mxu0 0.0
    %203 = vmatprep.subr.mxu0 0.0
    %204 = vmatpush2.msra.mxu0 %v157
    %205 = vmatprep.subr.mxu0 0.0
    %206 = vmatpush2.msra.mxu0 %v68
    %207 = vmatprep.subr.mxu0 0.0
    %208 = vmatpush2.msra.mxu0 %v67
    %209 = vmatprep.subr.mxu0 0.0
    %210 = vmatpush2.msra.mxu0 %v66
    %211 = vmatprep.subr.mxu0 0.0
    %212 = vmatpush2.msra.mxu0 %v65
    %213 = vmatprep.subr.mxu0 0.0
    %214 = vmatpush2.msra.mxu0 %v64
    %215 = vmatprep.subr.mxu0 0.0
    %216 = vmatpush2.msra.mxu0 %v63
    %217 = vmatprep.subr.mxu0 0.0
    %218 = vmatpush2.msra.mxu0 %v62
    %219 = vmatprep.subr.mxu0 0.0
    %220 = vmatpush2.msra.mxu0 %v61
    %221 = vmatprep.subr.mxu0 0.0
    %222 = vmatpush2.msra.mxu0 %v60
    %223 = vmatprep.mubr.f32.mxu0 %v153
    %224 = vmatmul.mubr.f32.gmra.mxu0 %v42
    %v225 = vpop.f32.mrf.mxu0
    %v226 = vadd.f32 %v148, %v225
    %v227 = vpop.f32.mrf.mxu0
    %228 = vdwg.mxu0
    %v229 = vld [vmem:[%s4] sm:$0x1]
    %v231 = vlaneseq
    %v232 = vshrl.u32 %v231, 7
    %v233 = vsub.s32 0, %v232
    %v234 = vrot.slane %v229, %v233
    %v236 = vadd.f32 %v226, %v234
    %v237 = vld [vmem:[%s5] sm:$0xff]
    %v238 = vld [vmem:[%s5 + $0x8] sm:$0xff]
    %v239 = vld [vmem:[%s5 + $0x10] sm:$0xff]
    %v240 = vld [vmem:[%s5 + $0x18] sm:$0xff]
    %v241 = vld [vmem:[%s5 + $0x20] sm:$0xff]
    %v242 = vld [vmem:[%s5 + $0x28] sm:$0xff]
    %v243 = vld [vmem:[%s5 + $0x30] sm:$0xff]
    %v244 = vld [vmem:[%s5 + $0x38] sm:$0xff]
    %v245 = vld [vmem:[%s5 + $0x40] sm:$0xff]
    %v246 = vld [vmem:[%s5 + $0x48] sm:$0xff]
    %v247 = vld [vmem:[%s5 + $0x50] sm:$0xff]
    %v248 = vld [vmem:[%s5 + $0x58] sm:$0xff]
    %v249 = vld [vmem:[%s5 + $0x60] sm:$0xff]
    %v250 = vld [vmem:[%s5 + $0x68] sm:$0xff]
    %v251 = vld [vmem:[%s5 + $0x70] sm:$0xff]
    %v252 = vld [vmem:[%s5 + $0x78] sm:$0xff]
    %v253 = vld [vmem:[%s10] sm:$0xff]
    %v254 = vld [vmem:[%s10 + $0x8] sm:$0xff]
    %v255 = vld [vmem:[%s10 + $0x10] sm:$0xff]
    %v256 = vld [vmem:[%s10 + $0x18] sm:$0xff]
    %v257 = vld [vmem:[%s11] sm:$0x1]
    %v258 = vld [vmem:[%s6] sm:$0xff]
    %v259 = vld [vmem:[%s6 + $0x8] sm:$0xff]
    %v260 = vld [vmem:[%s6 + $0x10] sm:$0xff]
    %v261 = vld [vmem:[%s6 + $0x18] sm:$0xff]
    %s262 = scalar_lea.vmem %s6, 32
    %v263 = vld [vmem:[%s262] sm:$0xff]
    %v264 = vld [vmem:[%s262 + $0x8] sm:$0xff]
    %v265 = vld [vmem:[%s262 + $0x10] sm:$0xff]
    %v266 = vld [vmem:[%s262 + $0x18] sm:$0xff]
    %v267 = vld [vmem:[%s7] sm:$0x1]
    %s268 = scalar_lea.vmem %s7, 1
    %v269 = vld [vmem:[%s268] sm:$0x1]
    %v270 = vld [vmem:[%s8] sm:$0xff]
    %v271 = vld [vmem:[%s8 + $0x8] sm:$0xff]
    %v272 = vld [vmem:[%s8 + $0x10] sm:$0xff]
    %v273 = vld [vmem:[%s8 + $0x18] sm:$0xff]
    %s274 = scalar_lea.vmem %s8, 32
    %v275 = vld [vmem:[%s274] sm:$0xff]
    %v276 = vld [vmem:[%s274 + $0x8] sm:$0xff]
    %v277 = vld [vmem:[%s274 + $0x10] sm:$0xff]
    %v278 = vld [vmem:[%s274 + $0x18] sm:$0xff]
    %v279 = vld [vmem:[%s9] sm:$0x1]
    %s280 = scalar_lea.vmem %s9, 1
    %v281 = vld [vmem:[%s280] sm:$0x1]
    %v283 = vlaneseq
    %v284 = vshrl.u32 %v283, 7
    %v285 = vsub.s32 0, %v284
    %v286 = vrot.slane %v267, %v285
    %vm288 = vcmask 261120
    %v290 = vsel %vm288, %v236, 0
    %292 = vmatprep.subr.mxu0 0.0
    %293 = vmatpush1.msra.mxu0 0.0
    %294 = vmatprep.subr.mxu0 0.0
    %295 = vmatpush1.msra.mxu0 0.0
    %296 = vmatprep.subr.mxu0 0.0
    %297 = vmatpush1.msra.mxu0 0.0
    %298 = vmatprep.subr.mxu0 0.0
    %299 = vmatpush1.msra.mxu0 0.0
    %300 = vmatprep.subr.mxu0 0.0
    %301 = vmatpush1.msra.mxu0 0.0
    %302 = vmatprep.subr.mxu0 0.0
    %303 = vmatpush1.msra.mxu0 0.0
    %304 = vmatprep.subr.mxu0 0.0
    %305 = vmatpush1.msra.mxu0 0.0
    %306 = vmatprep.subr.mxu0 0.0
    %307 = vmatpush1.msra.mxu0 0.0
    %308 = vmatprep.subr.mxu0 0.0
    %309 = vmatpush1.msra.mxu0 0.0
    %310 = vmatprep.subr.mxu0 0.0
    %311 = vmatpush1.msra.mxu0 0.0
    %312 = vmatprep.subr.mxu0 0.0
    %313 = vmatpush1.msra.mxu0 0.0
    %314 = vmatprep.subr.mxu0 0.0
    %315 = vmatpush1.msra.mxu0 0.0
    %316 = vmatprep.subr.mxu0 0.0
    %317 = vmatpush1.msra.mxu0 %v261
    %318 = vmatprep.subr.mxu0 0.0
    %319 = vmatpush1.msra.mxu0 %v260
    %320 = vmatprep.subr.mxu0 0.0
    %321 = vmatpush1.msra.mxu0 %v259
    %322 = vmatprep.subr.mxu0 0.0
    %323 = vmatpush1.msra.mxu0 %v258
    %324 = vmatprep.subr.mxu0 0.0
    %325 = vmatpush2.msra.mxu0 0.0
    %326 = vmatprep.subr.mxu0 0.0
    %327 = vmatpush2.msra.mxu0 0.0
    %328 = vmatprep.subr.mxu0 0.0
    %329 = vmatpush2.msra.mxu0 0.0
    %330 = vmatprep.subr.mxu0 0.0
    %331 = vmatpush2.msra.mxu0 0.0
    %332 = vmatprep.subr.mxu0 0.0
    %333 = vmatpush2.msra.mxu0 0.0
    %334 = vmatprep.subr.mxu0 0.0
    %335 = vmatpush2.msra.mxu0 0.0
    %336 = vmatprep.subr.mxu0 0.0
    %337 = vmatpush2.msra.mxu0 0.0
    %338 = vmatprep.subr.mxu0 0.0
    %339 = vmatpush2.msra.mxu0 0.0
    %340 = vmatprep.subr.mxu0 0.0
    %341 = vmatpush2.msra.mxu0 0.0
    %342 = vmatprep.subr.mxu0 0.0
    %343 = vmatpush2.msra.mxu0 0.0
    %344 = vmatprep.subr.mxu0 0.0
    %345 = vmatpush2.msra.mxu0 0.0
    %346 = vmatprep.subr.mxu0 0.0
    %347 = vmatpush2.msra.mxu0 0.0
    %348 = vmatprep.subr.mxu0 0.0
    %349 = vmatpush2.msra.mxu0 0.0
    %350 = vmatprep.subr.mxu0 0.0
    %351 = vmatpush2.msra.mxu0 0.0
    %352 = vmatprep.subr.mxu0 0.0
    %353 = vmatpush2.msra.mxu0 0.0
    %354 = vmatprep.subr.mxu0 0.0
    %355 = vmatpush2.msra.mxu0 0.0
    %356 = vmatprep.mubr.f32.mxu0 0.0
    %357 = vmatmul.mubr.f32.gmra.mxu0 %v290
    %v358 = vpop.f32.mrf.mxu0
    %v359 = vadd.f32 %v286, %v358
    %v360 = vpop.f32.mrf.mxu0
    %361 = vdwg.mxu0
    %v362 = vmax.f32 %v359, 0.0
    %v364 = vlaneseq
    %v365 = vshrl.u32 %v364, 7
    %v366 = vsub.s32 0, %v365
    %v367 = vrot.slane %v279, %v366
    %v370 = vsel %vm288, %v362, 0
    %372 = vmatprep.subr.mxu0 0.0
    %373 = vmatpush1.msra.mxu0 0.0
    %374 = vmatprep.subr.mxu0 0.0
    %375 = vmatpush1.msra.mxu0 0.0
    %376 = vmatprep.subr.mxu0 0.0
    %377 = vmatpush1.msra.mxu0 0.0
    %378 = vmatprep.subr.mxu0 0.0
    %379 = vmatpush1.msra.mxu0 0.0
    %380 = vmatprep.subr.mxu0 0.0
    %381 = vmatpush1.msra.mxu0 0.0
    %382 = vmatprep.subr.mxu0 0.0
    %383 = vmatpush1.msra.mxu0 0.0
    %384 = vmatprep.subr.mxu0 0.0
    %385 = vmatpush1.msra.mxu0 0.0
    %386 = vmatprep.subr.mxu0 0.0
    %387 = vmatpush1.msra.mxu0 0.0
    %388 = vmatprep.subr.mxu0 0.0
    %389 = vmatpush1.msra.mxu0 0.0
    %390 = vmatprep.subr.mxu0 0.0
    %391 = vmatpush1.msra.mxu0 0.0
    %392 = vmatprep.subr.mxu0 0.0
    %393 = vmatpush1.msra.mxu0 0.0
    %394 = vmatprep.subr.mxu0 0.0
    %395 = vmatpush1.msra.mxu0 0.0
    %396 = vmatprep.subr.mxu0 0.0
    %397 = vmatpush1.msra.mxu0 %v273
    %398 = vmatprep.subr.mxu0 0.0
    %399 = vmatpush1.msra.mxu0 %v272
    %400 = vmatprep.subr.mxu0 0.0
    %401 = vmatpush1.msra.mxu0 %v271
    %402 = vmatprep.subr.mxu0 0.0
    %403 = vmatpush1.msra.mxu0 %v270
    %404 = vmatprep.subr.mxu0 0.0
    %405 = vmatpush2.msra.mxu0 0.0
    %406 = vmatprep.subr.mxu0 0.0
    %407 = vmatpush2.msra.mxu0 0.0
    %408 = vmatprep.subr.mxu0 0.0
    %409 = vmatpush2.msra.mxu0 0.0
    %410 = vmatprep.subr.mxu0 0.0
    %411 = vmatpush2.msra.mxu0 0.0
    %412 = vmatprep.subr.mxu0 0.0
    %413 = vmatpush2.msra.mxu0 0.0
    %414 = vmatprep.subr.mxu0 0.0
    %415 = vmatpush2.msra.mxu0 0.0
    %416 = vmatprep.subr.mxu0 0.0
    %417 = vmatpush2.msra.mxu0 0.0
    %418 = vmatprep.subr.mxu0 0.0
    %419 = vmatpush2.msra.mxu0 0.0
    %420 = vmatprep.subr.mxu0 0.0
    %421 = vmatpush2.msra.mxu0 0.0
    %422 = vmatprep.subr.mxu0 0.0
    %423 = vmatpush2.msra.mxu0 0.0
    %424 = vmatprep.subr.mxu0 0.0
    %425 = vmatpush2.msra.mxu0 0.0
    %426 = vmatprep.subr.mxu0 0.0
    %427 = vmatpush2.msra.mxu0 0.0
    %428 = vmatprep.subr.mxu0 0.0
    %429 = vmatpush2.msra.mxu0 0.0
    %430 = vmatprep.subr.mxu0 0.0
    %431 = vmatpush2.msra.mxu0 0.0
    %432 = vmatprep.subr.mxu0 0.0
    %433 = vmatpush2.msra.mxu0 0.0
    %434 = vmatprep.subr.mxu0 0.0
    %435 = vmatpush2.msra.mxu0 0.0
    %436 = vmatprep.mubr.f32.mxu0 0.0
    %437 = vmatmul.mubr.f32.gmra.mxu0 %v370
    %v438 = vpop.f32.mrf.mxu0
    %v439 = vadd.f32 %v367, %v438
    %v440 = vpop.f32.mrf.mxu0
    %441 = vdwg.mxu0
    %v442 = vmax.f32 %v439, 0.0
    %v443 = vadd.f32 %v442, %v236
    %v445 = vlaneseq
    %v446 = vshrl.u32 %v445, 7
    %v447 = vsub.s32 0, %v446
    %v448 = vrot.slane %v269, %v447
    %v451 = vsel %vm288, %v443, 0
    %453 = vmatprep.subr.mxu0 0.0
    %454 = vmatpush1.msra.mxu0 0.0
    %455 = vmatprep.subr.mxu0 0.0
    %456 = vmatpush1.msra.mxu0 0.0
    %457 = vmatprep.subr.mxu0 0.0
    %458 = vmatpush1.msra.mxu0 0.0
    %459 = vmatprep.subr.mxu0 0.0
    %460 = vmatpush1.msra.mxu0 0.0
    %461 = vmatprep.subr.mxu0 0.0
    %462 = vmatpush1.msra.mxu0 0.0
    %463 = vmatprep.subr.mxu0 0.0
    %464 = vmatpush1.msra.mxu0 0.0
    %465 = vmatprep.subr.mxu0 0.0
    %466 = vmatpush1.msra.mxu0 0.0
    %467 = vmatprep.subr.mxu0 0.0
    %468 = vmatpush1.msra.mxu0 0.0
    %469 = vmatprep.subr.mxu0 0.0
    %470 = vmatpush1.msra.mxu0 0.0
    %471 = vmatprep.subr.mxu0 0.0
    %472 = vmatpush1.msra.mxu0 0.0
    %473 = vmatprep.subr.mxu0 0.0
    %474 = vmatpush1.msra.mxu0 0.0
    %475 = vmatprep.subr.mxu0 0.0
    %476 = vmatpush1.msra.mxu0 0.0
    %477 = vmatprep.subr.mxu0 0.0
    %478 = vmatpush1.msra.mxu0 %v266
    %479 = vmatprep.subr.mxu0 0.0
    %480 = vmatpush1.msra.mxu0 %v265
    %481 = vmatprep.subr.mxu0 0.0
    %482 = vmatpush1.msra.mxu0 %v264
    %483 = vmatprep.subr.mxu0 0.0
    %484 = vmatpush1.msra.mxu0 %v263
    %485 = vmatprep.subr.mxu0 0.0
    %486 = vmatpush2.msra.mxu0 0.0
    %487 = vmatprep.subr.mxu0 0.0
    %488 = vmatpush2.msra.mxu0 0.0
    %489 = vmatprep.subr.mxu0 0.0
    %490 = vmatpush2.msra.mxu0 0.0
    %491 = vmatprep.subr.mxu0 0.0
    %492 = vmatpush2.msra.mxu0 0.0
    %493 = vmatprep.subr.mxu0 0.0
    %494 = vmatpush2.msra.mxu0 0.0
    %495 = vmatprep.subr.mxu0 0.0
    %496 = vmatpush2.msra.mxu0 0.0
    %497 = vmatprep.subr.mxu0 0.0
    %498 = vmatpush2.msra.mxu0 0.0
    %499 = vmatprep.subr.mxu0 0.0
    %500 = vmatpush2.msra.mxu0 0.0
    %501 = vmatprep.subr.mxu0 0.0
    %502 = vmatpush2.msra.mxu0 0.0
    %503 = vmatprep.subr.mxu0 0.0
    %504 = vmatpush2.msra.mxu0 0.0
    %505 = vmatprep.subr.mxu0 0.0
    %506 = vmatpush2.msra.mxu0 0.0
    %507 = vmatprep.subr.mxu0 0.0
    %508 = vmatpush2.msra.mxu0 0.0
    %509 = vmatprep.subr.mxu0 0.0
    %510 = vmatpush2.msra.mxu0 0.0
    %511 = vmatprep.subr.mxu0 0.0
    %512 = vmatpush2.msra.mxu0 0.0
    %513 = vmatprep.subr.mxu0 0.0
    %514 = vmatpush2.msra.mxu0 0.0
    %515 = vmatprep.subr.mxu0 0.0
    %516 = vmatpush2.msra.mxu0 0.0
    %517 = vmatprep.mubr.f32.mxu0 0.0
    %518 = vmatmul.mubr.f32.gmra.mxu0 %v451
    %v519 = vpop.f32.mrf.mxu0
    %v520 = vadd.f32 %v448, %v519
    %v521 = vpop.f32.mrf.mxu0
    %522 = vdwg.mxu0
    %v523 = vmax.f32 %v520, 0.0
    %v525 = vlaneseq
    %v526 = vshrl.u32 %v525, 7
    %v527 = vsub.s32 0, %v526
    %v528 = vrot.slane %v281, %v527
    %v531 = vsel %vm288, %v523, 0
    %533 = vmatprep.subr.mxu0 0.0
    %534 = vmatpush1.msra.mxu0 0.0
    %535 = vmatprep.subr.mxu0 0.0
    %536 = vmatpush1.msra.mxu0 0.0
    %537 = vmatprep.subr.mxu0 0.0
    %538 = vmatpush1.msra.mxu0 0.0
    %539 = vmatprep.subr.mxu0 0.0
    %540 = vmatpush1.msra.mxu0 0.0
    %541 = vmatprep.subr.mxu0 0.0
    %542 = vmatpush1.msra.mxu0 0.0
    %543 = vmatprep.subr.mxu0 0.0
    %544 = vmatpush1.msra.mxu0 0.0
    %545 = vmatprep.subr.mxu0 0.0
    %546 = vmatpush1.msra.mxu0 0.0
    %547 = vmatprep.subr.mxu0 0.0
    %548 = vmatpush1.msra.mxu0 0.0
    %549 = vmatprep.subr.mxu0 0.0
    %550 = vmatpush1.msra.mxu0 0.0
    %551 = vmatprep.subr.mxu0 0.0
    %552 = vmatpush1.msra.mxu0 0.0
    %553 = vmatprep.subr.mxu0 0.0
    %554 = vmatpush1.msra.mxu0 0.0
    %555 = vmatprep.subr.mxu0 0.0
    %556 = vmatpush1.msra.mxu0 0.0
    %557 = vmatprep.subr.mxu0 0.0
    %558 = vmatpush1.msra.mxu0 %v278
    %559 = vmatprep.subr.mxu0 0.0
    %560 = vmatpush1.msra.mxu0 %v277
    %561 = vmatprep.subr.mxu0 0.0
    %562 = vmatpush1.msra.mxu0 %v276
    %563 = vmatprep.subr.mxu0 0.0
    %564 = vmatpush1.msra.mxu0 %v275
    %565 = vmatprep.subr.mxu0 0.0
    %566 = vmatpush2.msra.mxu0 0.0
    %567 = vmatprep.subr.mxu0 0.0
    %568 = vmatpush2.msra.mxu0 0.0
    %569 = vmatprep.subr.mxu0 0.0
    %570 = vmatpush2.msra.mxu0 0.0
    %571 = vmatprep.subr.mxu0 0.0
    %572 = vmatpush2.msra.mxu0 0.0
    %573 = vmatprep.subr.mxu0 0.0
    %574 = vmatpush2.msra.mxu0 0.0
    %575 = vmatprep.subr.mxu0 0.0
    %576 = vmatpush2.msra.mxu0 0.0
    %577 = vmatprep.subr.mxu0 0.0
    %578 = vmatpush2.msra.mxu0 0.0
    %579 = vmatprep.subr.mxu0 0.0
    %580 = vmatpush2.msra.mxu0 0.0
    %581 = vmatprep.subr.mxu0 0.0
    %582 = vmatpush2.msra.mxu0 0.0
    %583 = vmatprep.subr.mxu0 0.0
    %584 = vmatpush2.msra.mxu0 0.0
    %585 = vmatprep.subr.mxu0 0.0
    %586 = vmatpush2.msra.mxu0 0.0
    %587 = vmatprep.subr.mxu0 0.0
    %588 = vmatpush2.msra.mxu0 0.0
    %589 = vmatprep.subr.mxu0 0.0
    %590 = vmatpush2.msra.mxu0 0.0
    %591 = vmatprep.subr.mxu0 0.0
    %592 = vmatpush2.msra.mxu0 0.0
    %593 = vmatprep.subr.mxu0 0.0
    %594 = vmatpush2.msra.mxu0 0.0
    %595 = vmatprep.subr.mxu0 0.0
    %596 = vmatpush2.msra.mxu0 0.0
    %597 = vmatprep.mubr.f32.mxu0 0.0
    %598 = vmatmul.mubr.f32.gmra.mxu0 %v531
    %v599 = vpop.f32.mrf.mxu0
    %v600 = vadd.f32 %v528, %v599
    %v601 = vpop.f32.mrf.mxu0
    %602 = vdwg.mxu0
    %v603 = vmax.f32 %v600, 0.0
    %v604 = vadd.f32 %v603, %v443
    %v606 = vlaneseq
    %v607 = vshrl.u32 %v606, 7
    %v608 = vsub.s32 0, %v607
    %v609 = vrot.slane %v257, %v608
    %v612 = vsel %vm288, %v604, 0
    %614 = vmatprep.subr.mxu0 0.0
    %615 = vmatpush1.msra.mxu0 0.0
    %616 = vmatprep.subr.mxu0 0.0
    %617 = vmatpush1.msra.mxu0 0.0
    %618 = vmatprep.subr.mxu0 0.0
    %619 = vmatpush1.msra.mxu0 0.0
    %620 = vmatprep.subr.mxu0 0.0
    %621 = vmatpush1.msra.mxu0 0.0
    %622 = vmatprep.subr.mxu0 0.0
    %623 = vmatpush1.msra.mxu0 0.0
    %624 = vmatprep.subr.mxu0 0.0
    %625 = vmatpush1.msra.mxu0 0.0
    %626 = vmatprep.subr.mxu0 0.0
    %627 = vmatpush1.msra.mxu0 0.0
    %628 = vmatprep.subr.mxu0 0.0
    %629 = vmatpush1.msra.mxu0 0.0
    %630 = vmatprep.subr.mxu0 0.0
    %631 = vmatpush1.msra.mxu0 0.0
    %632 = vmatprep.subr.mxu0 0.0
    %633 = vmatpush1.msra.mxu0 0.0
    %634 = vmatprep.subr.mxu0 0.0
    %635 = vmatpush1.msra.mxu0 0.0
    %636 = vmatprep.subr.mxu0 0.0
    %637 = vmatpush1.msra.mxu0 0.0
    %638 = vmatprep.subr.mxu0 0.0
    %639 = vmatpush1.msra.mxu0 %v256
    %640 = vmatprep.subr.mxu0 0.0
    %641 = vmatpush1.msra.mxu0 %v255
    %642 = vmatprep.subr.mxu0 0.0
    %643 = vmatpush1.msra.mxu0 %v254
    %644 = vmatprep.subr.mxu0 0.0
    %645 = vmatpush1.msra.mxu0 %v253
    %646 = vmatprep.subr.mxu0 0.0
    %647 = vmatpush2.msra.mxu0 0.0
    %648 = vmatprep.subr.mxu0 0.0
    %649 = vmatpush2.msra.mxu0 0.0
    %650 = vmatprep.subr.mxu0 0.0
    %651 = vmatpush2.msra.mxu0 0.0
    %652 = vmatprep.subr.mxu0 0.0
    %653 = vmatpush2.msra.mxu0 0.0
    %654 = vmatprep.subr.mxu0 0.0
    %655 = vmatpush2.msra.mxu0 0.0
    %656 = vmatprep.subr.mxu0 0.0
    %657 = vmatpush2.msra.mxu0 0.0
    %658 = vmatprep.subr.mxu0 0.0
    %659 = vmatpush2.msra.mxu0 0.0
    %660 = vmatprep.subr.mxu0 0.0
    %661 = vmatpush2.msra.mxu0 0.0
    %662 = vmatprep.subr.mxu0 0.0
    %663 = vmatpush2.msra.mxu0 0.0
    %664 = vmatprep.subr.mxu0 0.0
    %665 = vmatpush2.msra.mxu0 0.0
    %666 = vmatprep.subr.mxu0 0.0
    %667 = vmatpush2.msra.mxu0 0.0
    %668 = vmatprep.subr.mxu0 0.0
    %669 = vmatpush2.msra.mxu0 0.0
    %670 = vmatprep.subr.mxu0 0.0
    %671 = vmatpush2.msra.mxu0 0.0
    %672 = vmatprep.subr.mxu0 0.0
    %673 = vmatpush2.msra.mxu0 0.0
    %674 = vmatprep.subr.mxu0 0.0
    %675 = vmatpush2.msra.mxu0 0.0
    %676 = vmatprep.subr.mxu0 0.0
    %677 = vmatpush2.msra.mxu0 0.0
    %678 = vmatprep.mubr.f32.mxu0 0.0
    %679 = vmatmul.mubr.f32.gmra.mxu0 %v612
    %v680 = vpop.f32.mrf.mxu0
    %v681 = vadd.f32 %v609, %v680
    %v682 = vpop.f32.mrf.mxu0
    %683 = vdwg.mxu0
    %684 = vmatprep.subr.mxu0 0.0
    %685 = vmatpush1.msra.mxu0 %v252
    %686 = vmatprep.subr.mxu0 0.0
    %687 = vmatpush1.msra.mxu0 %v251
    %688 = vmatprep.subr.mxu0 0.0
    %689 = vmatpush1.msra.mxu0 %v250
    %690 = vmatprep.subr.mxu0 0.0
    %691 = vmatpush1.msra.mxu0 %v249
    %692 = vmatprep.subr.mxu0 0.0
    %693 = vmatpush1.msra.mxu0 %v248
    %694 = vmatprep.subr.mxu0 0.0
    %695 = vmatpush1.msra.mxu0 %v247
    %696 = vmatprep.subr.mxu0 0.0
    %697 = vmatpush1.msra.mxu0 %v246
    %698 = vmatprep.subr.mxu0 0.0
    %699 = vmatpush1.msra.mxu0 %v245
    %700 = vmatprep.subr.mxu0 0.0
    %701 = vmatpush1.msra.mxu0 %v244
    %702 = vmatprep.subr.mxu0 0.0
    %703 = vmatpush1.msra.mxu0 %v243
    %704 = vmatprep.subr.mxu0 0.0
    %705 = vmatpush1.msra.mxu0 %v242
    %706 = vmatprep.subr.mxu0 0.0
    %707 = vmatpush1.msra.mxu0 %v241
    %708 = vmatprep.subr.mxu0 0.0
    %709 = vmatpush1.msra.mxu0 %v240
    %710 = vmatprep.subr.mxu0 0.0
    %711 = vmatpush1.msra.mxu0 %v239
    %712 = vmatprep.subr.mxu0 0.0
    %713 = vmatpush1.msra.mxu0 %v238
    %714 = vmatprep.subr.mxu0 0.0
    %715 = vmatpush1.msra.mxu0 %v237
    %716 = vmatprep.subr.mxu0 0.0
    %717 = vmatpush2.msra.mxu0 0.0
    %718 = vmatprep.subr.mxu0 0.0
    %719 = vmatpush2.msra.mxu0 0.0
    %720 = vmatprep.subr.mxu0 0.0
    %721 = vmatpush2.msra.mxu0 0.0
    %722 = vmatprep.subr.mxu0 0.0
    %723 = vmatpush2.msra.mxu0 0.0
    %724 = vmatprep.subr.mxu0 0.0
    %725 = vmatpush2.msra.mxu0 0.0
    %726 = vmatprep.subr.mxu0 0.0
    %727 = vmatpush2.msra.mxu0 0.0
    %728 = vmatprep.subr.mxu0 0.0
    %729 = vmatpush2.msra.mxu0 0.0
    %730 = vmatprep.subr.mxu0 0.0
    %731 = vmatpush2.msra.mxu0 0.0
    %732 = vmatprep.subr.mxu0 0.0
    %733 = vmatpush2.msra.mxu0 0.0
    %734 = vmatprep.subr.mxu0 0.0
    %735 = vmatpush2.msra.mxu0 0.0
    %736 = vmatprep.subr.mxu0 0.0
    %737 = vmatpush2.msra.mxu0 0.0
    %738 = vmatprep.subr.mxu0 0.0
    %739 = vmatpush2.msra.mxu0 0.0
    %740 = vmatprep.subr.mxu0 0.0
    %741 = vmatpush2.msra.mxu0 0.0
    %742 = vmatprep.subr.mxu0 0.0
    %743 = vmatpush2.msra.mxu0 0.0
    %744 = vmatprep.subr.mxu0 0.0
    %745 = vmatpush2.msra.mxu0 0.0
    %746 = vmatprep.subr.mxu0 0.0
    %747 = vmatpush2.msra.mxu0 0.0
    %748 = vmatprep.mubr.f32.mxu0 0.0
    %749 = vmatmul.mubr.f32.gmra.mxu0 %v681
    %v750 = vpop.f32.mrf.mxu0
    %v751 = vadd.f32 0.0, %v750
    %v752 = vpop.f32.mrf.mxu0
    %753 = vdwg.mxu0
    %v754 = vadd.f32 %v236, %v751
    %v756 = vsel %vm288, %v754, 0
    %758 = vmatprep.subr.mxu0 0.0
    %759 = vmatpush1.msra.mxu0 0.0
    %760 = vmatprep.subr.mxu0 0.0
    %761 = vmatpush1.msra.mxu0 0.0
    %762 = vmatprep.subr.mxu0 0.0
    %763 = vmatpush1.msra.mxu0 0.0
    %764 = vmatprep.subr.mxu0 0.0
    %765 = vmatpush1.msra.mxu0 0.0
    %766 = vmatprep.subr.mxu0 0.0
    %767 = vmatpush1.msra.mxu0 0.0
    %768 = vmatprep.subr.mxu0 0.0
    %769 = vmatpush1.msra.mxu0 0.0
    %770 = vmatprep.subr.mxu0 0.0
    %771 = vmatpush1.msra.mxu0 0.0
    %772 = vmatprep.subr.mxu0 0.0
    %773 = vmatpush1.msra.mxu0 0.0
    %774 = vmatprep.subr.mxu0 0.0
    %775 = vmatpush1.msra.mxu0 0.0
    %776 = vmatprep.subr.mxu0 0.0
    %777 = vmatpush1.msra.mxu0 0.0
    %778 = vmatprep.subr.mxu0 0.0
    %779 = vmatpush1.msra.mxu0 0.0
    %780 = vmatprep.subr.mxu0 0.0
    %781 = vmatpush1.msra.mxu0 0.0
    %782 = vmatprep.subr.mxu0 0.0
    %783 = vmatpush1.msra.mxu0 %v261
    %784 = vmatprep.subr.mxu0 0.0
    %785 = vmatpush1.msra.mxu0 %v260
    %786 = vmatprep.subr.mxu0 0.0
    %787 = vmatpush1.msra.mxu0 %v259
    %788 = vmatprep.subr.mxu0 0.0
    %789 = vmatpush1.msra.mxu0 %v258
    %790 = vmatprep.subr.mxu0 0.0
    %791 = vmatpush2.msra.mxu0 0.0
    %792 = vmatprep.subr.mxu0 0.0
    %793 = vmatpush2.msra.mxu0 0.0
    %794 = vmatprep.subr.mxu0 0.0
    %795 = vmatpush2.msra.mxu0 0.0
    %796 = vmatprep.subr.mxu0 0.0
    %797 = vmatpush2.msra.mxu0 0.0
    %798 = vmatprep.subr.mxu0 0.0
    %799 = vmatpush2.msra.mxu0 0.0
    %800 = vmatprep.subr.mxu0 0.0
    %801 = vmatpush2.msra.mxu0 0.0
    %802 = vmatprep.subr.mxu0 0.0
    %803 = vmatpush2.msra.mxu0 0.0
    %804 = vmatprep.subr.mxu0 0.0
    %805 = vmatpush2.msra.mxu0 0.0
    %806 = vmatprep.subr.mxu0 0.0
    %807 = vmatpush2.msra.mxu0 0.0
    %808 = vmatprep.subr.mxu0 0.0
    %809 = vmatpush2.msra.mxu0 0.0
    %810 = vmatprep.subr.mxu0 0.0
    %811 = vmatpush2.msra.mxu0 0.0
    %812 = vmatprep.subr.mxu0 0.0
    %813 = vmatpush2.msra.mxu0 0.0
    %814 = vmatprep.subr.mxu0 0.0
    %815 = vmatpush2.msra.mxu0 0.0
    %816 = vmatprep.subr.mxu0 0.0
    %817 = vmatpush2.msra.mxu0 0.0
    %818 = vmatprep.subr.mxu0 0.0
    %819 = vmatpush2.msra.mxu0 0.0
    %820 = vmatprep.subr.mxu0 0.0
    %821 = vmatpush2.msra.mxu0 0.0
    %822 = vmatprep.mubr.f32.mxu0 0.0
    %823 = vmatmul.mubr.f32.gmra.mxu0 %v756
    %v824 = vpop.f32.mrf.mxu0
    %v825 = vadd.f32 %v286, %v824
    %v826 = vpop.f32.mrf.mxu0
    %827 = vdwg.mxu0
    %v828 = vmax.f32 %v825, 0.0
    %v830 = vsel %vm288, %v828, 0
    %832 = vmatprep.subr.mxu0 0.0
    %833 = vmatpush1.msra.mxu0 0.0
    %834 = vmatprep.subr.mxu0 0.0
    %835 = vmatpush1.msra.mxu0 0.0
    %836 = vmatprep.subr.mxu0 0.0
    %837 = vmatpush1.msra.mxu0 0.0
    %838 = vmatprep.subr.mxu0 0.0
    %839 = vmatpush1.msra.mxu0 0.0
    %840 = vmatprep.subr.mxu0 0.0
    %841 = vmatpush1.msra.mxu0 0.0
    %842 = vmatprep.subr.mxu0 0.0
    %843 = vmatpush1.msra.mxu0 0.0
    %844 = vmatprep.subr.mxu0 0.0
    %845 = vmatpush1.msra.mxu0 0.0
    %846 = vmatprep.subr.mxu0 0.0
    %847 = vmatpush1.msra.mxu0 0.0
    %848 = vmatprep.subr.mxu0 0.0
    %849 = vmatpush1.msra.mxu0 0.0
    %850 = vmatprep.subr.mxu0 0.0
    %851 = vmatpush1.msra.mxu0 0.0
    %852 = vmatprep.subr.mxu0 0.0
    %853 = vmatpush1.msra.mxu0 0.0
    %854 = vmatprep.subr.mxu0 0.0
    %855 = vmatpush1.msra.mxu0 0.0
    %856 = vmatprep.subr.mxu0 0.0
    %857 = vmatpush1.msra.mxu0 %v273
    %858 = vmatprep.subr.mxu0 0.0
    %859 = vmatpush1.msra.mxu0 %v272
    %860 = vmatprep.subr.mxu0 0.0
    %861 = vmatpush1.msra.mxu0 %v271
    %862 = vmatprep.subr.mxu0 0.0
    %863 = vmatpush1.msra.mxu0 %v270
    %864 = vmatprep.subr.mxu0 0.0
    %865 = vmatpush2.msra.mxu0 0.0
    %866 = vmatprep.subr.mxu0 0.0
    %867 = vmatpush2.msra.mxu0 0.0
    %868 = vmatprep.subr.mxu0 0.0
    %869 = vmatpush2.msra.mxu0 0.0
    %870 = vmatprep.subr.mxu0 0.0
    %871 = vmatpush2.msra.mxu0 0.0
    %872 = vmatprep.subr.mxu0 0.0
    %873 = vmatpush2.msra.mxu0 0.0
    %874 = vmatprep.subr.mxu0 0.0
    %875 = vmatpush2.msra.mxu0 0.0
    %876 = vmatprep.subr.mxu0 0.0
    %877 = vmatpush2.msra.mxu0 0.0
    %878 = vmatprep.subr.mxu0 0.0
    %879 = vmatpush2.msra.mxu0 0.0
    %880 = vmatprep.subr.mxu0 0.0
    %881 = vmatpush2.msra.mxu0 0.0
    %882 = vmatprep.subr.mxu0 0.0
    %883 = vmatpush2.msra.mxu0 0.0
    %884 = vmatprep.subr.mxu0 0.0
    %885 = vmatpush2.msra.mxu0 0.0
    %886 = vmatprep.subr.mxu0 0.0
    %887 = vmatpush2.msra.mxu0 0.0
    %888 = vmatprep.subr.mxu0 0.0
    %889 = vmatpush2.msra.mxu0 0.0
    %890 = vmatprep.subr.mxu0 0.0
    %891 = vmatpush2.msra.mxu0 0.0
    %892 = vmatprep.subr.mxu0 0.0
    %893 = vmatpush2.msra.mxu0 0.0
    %894 = vmatprep.subr.mxu0 0.0
    %895 = vmatpush2.msra.mxu0 0.0
    %896 = vmatprep.mubr.f32.mxu0 0.0
    %897 = vmatmul.mubr.f32.gmra.mxu0 %v830
    %v898 = vpop.f32.mrf.mxu0
    %v899 = vadd.f32 %v367, %v898
    %v900 = vpop.f32.mrf.mxu0
    %901 = vdwg.mxu0
    %v902 = vmax.f32 %v899, 0.0
    %v903 = vadd.f32 %v902, %v754
    %v905 = vsel %vm288, %v903, 0
    %907 = vmatprep.subr.mxu0 0.0
    %908 = vmatpush1.msra.mxu0 0.0
    %909 = vmatprep.subr.mxu0 0.0
    %910 = vmatpush1.msra.mxu0 0.0
    %911 = vmatprep.subr.mxu0 0.0
    %912 = vmatpush1.msra.mxu0 0.0
    %913 = vmatprep.subr.mxu0 0.0
    %914 = vmatpush1.msra.mxu0 0.0
    %915 = vmatprep.subr.mxu0 0.0
    %916 = vmatpush1.msra.mxu0 0.0
    %917 = vmatprep.subr.mxu0 0.0
    %918 = vmatpush1.msra.mxu0 0.0
    %919 = vmatprep.subr.mxu0 0.0
    %920 = vmatpush1.msra.mxu0 0.0
    %921 = vmatprep.subr.mxu0 0.0
    %922 = vmatpush1.msra.mxu0 0.0
    %923 = vmatprep.subr.mxu0 0.0
    %924 = vmatpush1.msra.mxu0 0.0
    %925 = vmatprep.subr.mxu0 0.0
    %926 = vmatpush1.msra.mxu0 0.0
    %927 = vmatprep.subr.mxu0 0.0
    %928 = vmatpush1.msra.mxu0 0.0
    %929 = vmatprep.subr.mxu0 0.0
    %930 = vmatpush1.msra.mxu0 0.0
    %931 = vmatprep.subr.mxu0 0.0
    %932 = vmatpush1.msra.mxu0 %v266
    %933 = vmatprep.subr.mxu0 0.0
    %934 = vmatpush1.msra.mxu0 %v265
    %935 = vmatprep.subr.mxu0 0.0
    %936 = vmatpush1.msra.mxu0 %v264
    %937 = vmatprep.subr.mxu0 0.0
    %938 = vmatpush1.msra.mxu0 %v263
    %939 = vmatprep.subr.mxu0 0.0
    %940 = vmatpush2.msra.mxu0 0.0
    %941 = vmatprep.subr.mxu0 0.0
    %942 = vmatpush2.msra.mxu0 0.0
    %943 = vmatprep.subr.mxu0 0.0
    %944 = vmatpush2.msra.mxu0 0.0
    %945 = vmatprep.subr.mxu0 0.0
    %946 = vmatpush2.msra.mxu0 0.0
    %947 = vmatprep.subr.mxu0 0.0
    %948 = vmatpush2.msra.mxu0 0.0
    %949 = vmatprep.subr.mxu0 0.0
    %950 = vmatpush2.msra.mxu0 0.0
    %951 = vmatprep.subr.mxu0 0.0
    %952 = vmatpush2.msra.mxu0 0.0
    %953 = vmatprep.subr.mxu0 0.0
    %954 = vmatpush2.msra.mxu0 0.0
    %955 = vmatprep.subr.mxu0 0.0
    %956 = vmatpush2.msra.mxu0 0.0
    %957 = vmatprep.subr.mxu0 0.0
    %958 = vmatpush2.msra.mxu0 0.0
    %959 = vmatprep.subr.mxu0 0.0
    %960 = vmatpush2.msra.mxu0 0.0
    %961 = vmatprep.subr.mxu0 0.0
    %962 = vmatpush2.msra.mxu0 0.0
    %963 = vmatprep.subr.mxu0 0.0
    %964 = vmatpush2.msra.mxu0 0.0
    %965 = vmatprep.subr.mxu0 0.0
    %966 = vmatpush2.msra.mxu0 0.0
    %967 = vmatprep.subr.mxu0 0.0
    %968 = vmatpush2.msra.mxu0 0.0
    %969 = vmatprep.subr.mxu0 0.0
    %970 = vmatpush2.msra.mxu0 0.0
    %971 = vmatprep.mubr.f32.mxu0 0.0
    %972 = vmatmul.mubr.f32.gmra.mxu0 %v905
    %v973 = vpop.f32.mrf.mxu0
    %v974 = vadd.f32 %v448, %v973
    %v975 = vpop.f32.mrf.mxu0
    %976 = vdwg.mxu0
    %v977 = vmax.f32 %v974, 0.0
    %v979 = vsel %vm288, %v977, 0
    %981 = vmatprep.subr.mxu0 0.0
    %982 = vmatpush1.msra.mxu0 0.0
    %983 = vmatprep.subr.mxu0 0.0
    %984 = vmatpush1.msra.mxu0 0.0
    %985 = vmatprep.subr.mxu0 0.0
    %986 = vmatpush1.msra.mxu0 0.0
    %987 = vmatprep.subr.mxu0 0.0
    %988 = vmatpush1.msra.mxu0 0.0
    %989 = vmatprep.subr.mxu0 0.0
    %990 = vmatpush1.msra.mxu0 0.0
    %991 = vmatprep.subr.mxu0 0.0
    %992 = vmatpush1.msra.mxu0 0.0
    %993 = vmatprep.subr.mxu0 0.0
    %994 = vmatpush1.msra.mxu0 0.0
    %995 = vmatprep.subr.mxu0 0.0
    %996 = vmatpush1.msra.mxu0 0.0
    %997 = vmatprep.subr.mxu0 0.0
    %998 = vmatpush1.msra.mxu0 0.0
    %999 = vmatprep.subr.mxu0 0.0
    %1000 = vmatpush1.msra.mxu0 0.0
    %1001 = vmatprep.subr.mxu0 0.0
    %1002 = vmatpush1.msra.mxu0 0.0
    %1003 = vmatprep.subr.mxu0 0.0
    %1004 = vmatpush1.msra.mxu0 0.0
    %1005 = vmatprep.subr.mxu0 0.0
    %1006 = vmatpush1.msra.mxu0 %v278
    %1007 = vmatprep.subr.mxu0 0.0
    %1008 = vmatpush1.msra.mxu0 %v277
    %1009 = vmatprep.subr.mxu0 0.0
    %1010 = vmatpush1.msra.mxu0 %v276
    %1011 = vmatprep.subr.mxu0 0.0
    %1012 = vmatpush1.msra.mxu0 %v275
    %1013 = vmatprep.subr.mxu0 0.0
    %1014 = vmatpush2.msra.mxu0 0.0
    %1015 = vmatprep.subr.mxu0 0.0
    %1016 = vmatpush2.msra.mxu0 0.0
    %1017 = vmatprep.subr.mxu0 0.0
    %1018 = vmatpush2.msra.mxu0 0.0
    %1019 = vmatprep.subr.mxu0 0.0
    %1020 = vmatpush2.msra.mxu0 0.0
    %1021 = vmatprep.subr.mxu0 0.0
    %1022 = vmatpush2.msra.mxu0 0.0
    %1023 = vmatprep.subr.mxu0 0.0
    %1024 = vmatpush2.msra.mxu0 0.0
    %1025 = vmatprep.subr.mxu0 0.0
    %1026 = vmatpush2.msra.mxu0 0.0
    %1027 = vmatprep.subr.mxu0 0.0
    %1028 = vmatpush2.msra.mxu0 0.0
    %1029 = vmatprep.subr.mxu0 0.0
    %1030 = vmatpush2.msra.mxu0 0.0
    %1031 = vmatprep.subr.mxu0 0.0
    %1032 = vmatpush2.msra.mxu0 0.0
    %1033 = vmatprep.subr.mxu0 0.0
    %1034 = vmatpush2.msra.mxu0 0.0
    %1035 = vmatprep.subr.mxu0 0.0
    %1036 = vmatpush2.msra.mxu0 0.0
    %1037 = vmatprep.subr.mxu0 0.0
    %1038 = vmatpush2.msra.mxu0 0.0
    %1039 = vmatprep.subr.mxu0 0.0
    %1040 = vmatpush2.msra.mxu0 0.0
    %1041 = vmatprep.subr.mxu0 0.0
    %1042 = vmatpush2.msra.mxu0 0.0
    %1043 = vmatprep.subr.mxu0 0.0
    %1044 = vmatpush2.msra.mxu0 0.0
    %1045 = vmatprep.mubr.f32.mxu0 0.0
    %1046 = vmatmul.mubr.f32.gmra.mxu0 %v979
    %v1047 = vpop.f32.mrf.mxu0
    %v1048 = vadd.f32 %v528, %v1047
    %v1049 = vpop.f32.mrf.mxu0
    %1050 = vdwg.mxu0
    %v1051 = vmax.f32 %v1048, 0.0
    %v1052 = vadd.f32 %v1051, %v903
    %v1054 = vsel %vm288, %v1052, 0
    %1056 = vmatprep.subr.mxu0 0.0
    %1057 = vmatpush1.msra.mxu0 0.0
    %1058 = vmatprep.subr.mxu0 0.0
    %1059 = vmatpush1.msra.mxu0 0.0
    %1060 = vmatprep.subr.mxu0 0.0
    %1061 = vmatpush1.msra.mxu0 0.0
    %1062 = vmatprep.subr.mxu0 0.0
    %1063 = vmatpush1.msra.mxu0 0.0
    %1064 = vmatprep.subr.mxu0 0.0
    %1065 = vmatpush1.msra.mxu0 0.0
    %1066 = vmatprep.subr.mxu0 0.0
    %1067 = vmatpush1.msra.mxu0 0.0
    %1068 = vmatprep.subr.mxu0 0.0
    %1069 = vmatpush1.msra.mxu0 0.0
    %1070 = vmatprep.subr.mxu0 0.0
    %1071 = vmatpush1.msra.mxu0 0.0
    %1072 = vmatprep.subr.mxu0 0.0
    %1073 = vmatpush1.msra.mxu0 0.0
    %1074 = vmatprep.subr.mxu0 0.0
    %1075 = vmatpush1.msra.mxu0 0.0
    %1076 = vmatprep.subr.mxu0 0.0
    %1077 = vmatpush1.msra.mxu0 0.0
    %1078 = vmatprep.subr.mxu0 0.0
    %1079 = vmatpush1.msra.mxu0 0.0
    %1080 = vmatprep.subr.mxu0 0.0
    %1081 = vmatpush1.msra.mxu0 %v256
    %1082 = vmatprep.subr.mxu0 0.0
    %1083 = vmatpush1.msra.mxu0 %v255
    %1084 = vmatprep.subr.mxu0 0.0
    %1085 = vmatpush1.msra.mxu0 %v254
    %1086 = vmatprep.subr.mxu0 0.0
    %1087 = vmatpush1.msra.mxu0 %v253
    %1088 = vmatprep.subr.mxu0 0.0
    %1089 = vmatpush2.msra.mxu0 0.0
    %1090 = vmatprep.subr.mxu0 0.0
    %1091 = vmatpush2.msra.mxu0 0.0
    %1092 = vmatprep.subr.mxu0 0.0
    %1093 = vmatpush2.msra.mxu0 0.0
    %1094 = vmatprep.subr.mxu0 0.0
    %1095 = vmatpush2.msra.mxu0 0.0
    %1096 = vmatprep.subr.mxu0 0.0
    %1097 = vmatpush2.msra.mxu0 0.0
    %1098 = vmatprep.subr.mxu0 0.0
    %1099 = vmatpush2.msra.mxu0 0.0
    %1100 = vmatprep.subr.mxu0 0.0
    %1101 = vmatpush2.msra.mxu0 0.0
    %1102 = vmatprep.subr.mxu0 0.0
    %1103 = vmatpush2.msra.mxu0 0.0
    %1104 = vmatprep.subr.mxu0 0.0
    %1105 = vmatpush2.msra.mxu0 0.0
    %1106 = vmatprep.subr.mxu0 0.0
    %1107 = vmatpush2.msra.mxu0 0.0
    %1108 = vmatprep.subr.mxu0 0.0
    %1109 = vmatpush2.msra.mxu0 0.0
    %1110 = vmatprep.subr.mxu0 0.0
    %1111 = vmatpush2.msra.mxu0 0.0
    %1112 = vmatprep.subr.mxu0 0.0
    %1113 = vmatpush2.msra.mxu0 0.0
    %1114 = vmatprep.subr.mxu0 0.0
    %1115 = vmatpush2.msra.mxu0 0.0
    %1116 = vmatprep.subr.mxu0 0.0
    %1117 = vmatpush2.msra.mxu0 0.0
    %1118 = vmatprep.subr.mxu0 0.0
    %1119 = vmatpush2.msra.mxu0 0.0
    %1120 = vmatprep.mubr.f32.mxu0 0.0
    %1121 = vmatmul.mubr.f32.gmra.mxu0 %v1054
    %v1122 = vpop.f32.mrf.mxu0
    %v1123 = vadd.f32 %v609, %v1122
    %v1124 = vpop.f32.mrf.mxu0
    %1125 = vdwg.mxu0
    %v1126 = vadd.f32 %v1123, %v681
    %1127 = vst [vmem:[#allocation2] sm:$0xff] %v1126
    // Predicated region
    $region50: #{mosh_regressor_pallas.1} parent=1 // pred_check
      _
    $region51: #{mosh_regressor_pallas.1} parent=1 // pred_check_branch
      %1129 = sbr.rel (0) target = $region53
    $region52: #{mosh_regressor_pallas.1} parent=1 // pred_region
      %s1131 = ssub.s32 128, 128
      %1132 = vsyncadd [#allocation3], %s1131
      %s1134 = sshll.u32 [#allocation2], 4
      %s1135 = int_to_ptr.vmem [resolvable:$true] %s1134
      %1137 = dma.vmem_to_hbm [thread:$0]  %s1135, 128, %s12, [#allocation3]
    $region53: #{mosh_regressor_pallas.1} parent=1 // pred_fallthru
      _
    // Predicated region
    $region54: #{mosh_regressor_pallas.1} parent=1 // pred_check
      _
    $region55: #{mosh_regressor_pallas.1} parent=1 // pred_check_branch
      %1139 = sbr.rel (0) target = $region57
    $region56: #{mosh_regressor_pallas.1} parent=1 // pred_region
      %1140 = dma.done [#allocation3], 128
    $region57: #{mosh_regressor_pallas.1} parent=1 // pred_fallthru
      _
    %1141 = vsyncpa [#allocation3], 1

</llo_original>
